<compile_context>
chip_gen: v7x
topology: tpu7x:2x2x1
jax: 0.10.0
libtpu: 0.0.40
codegen_flags: <defaults>
</compile_context>

<pallas_src>
import jax
import jax.numpy as jnp
from jax.experimental import pallas as pl
from jax.experimental.pallas import tpu as pltpu


N_HIDDEN = 16
N_LATENT = 5
N_WINDOW = 5
_LAT_PAD = 8          # latent padded to a sublane multiple


def _round_up(x, m):
    return (x + m - 1) // m * m


# --------------------------------------------------------------------------
# Parameter init (PyTorch nn.Linear-like): weights (in, out), biases (out,)
# --------------------------------------------------------------------------
def init_params(key, feats):
    n = feats * N_WINDOW
    H, L = N_HIDDEN, N_LATENT

    def lin(k, fan_in, fan_out):
        bound = 1.0 / (fan_in ** 0.5)
        kw, kb = jax.random.split(k)
        w = jax.random.uniform(kw, (fan_in, fan_out), jnp.float32,
                               minval=-bound, maxval=bound)
        b = jax.random.uniform(kb, (fan_out,), jnp.float32,
                               minval=-bound, maxval=bound)
        return w, b

    keys = jax.random.split(key, 9)
    p = {}
    p["e1_w"], p["e1_b"] = lin(keys[0], n, H)
    p["e2_w"], p["e2_b"] = lin(keys[1], H, H)
    p["e3_w"], p["e3_b"] = lin(keys[2], H, L)
    p["d11_w"], p["d11_b"] = lin(keys[3], L, H)
    p["d12_w"], p["d12_b"] = lin(keys[4], H, H)
    p["d13_w"], p["d13_b"] = lin(keys[5], H, n)
    p["d21_w"], p["d21_b"] = lin(keys[6], L, H)
    p["d22_w"], p["d22_b"] = lin(keys[7], H, H)
    p["d23_w"], p["d23_b"] = lin(keys[8], H, n)
    return p


# --------------------------------------------------------------------------
# Pack all parameters into one lane-padded slab (single DMA, VMEM-resident).
# decoder1/decoder2 are fused into one "wide" decoder:
#   layer1 : (LP, 2H)    = [d11 | d21]            (zero rows L..LP)
#   layer2 : (2H, 2H)    = blockdiag(d12, d22)
#   layer3 : (2H, 2*NP)  : rows[:H],  cols[:n]      = d13
#                          rows[H:],  cols[NP:NP+n] = d23
# Zero padding everywhere else; padded rows/cols contribute nothing to the
# matmuls, and padded sigmoid outputs (0.5) only hit zero weight rows / get
# sliced off in the wrapper.
# --------------------------------------------------------------------------
def pack_params(params):
    n = params["e1_w"].shape[0]
    H, L, LP = N_HIDDEN, N_LATENT, _LAT_PAD
    H2 = 2 * H
    NP = _round_up(n, 128)
    C = 2 * NP

    off = {}
    r = 0
    off["e1"] = r; r += NP
    off["e2"] = r; r += H
    off["e3"] = r; r += H
    off["d1"] = r; r += LP
    off["d2"] = r; r += H2
    off["d3"] = r; r += H2
    off["bias"] = r; r += 8
    R = _round_up(r, 8)

    s = jnp.zeros((R, C), jnp.float32)
    s = s.at[off["e1"]:off["e1"] + n, :H].set(params["e1_w"])
    s = s.at[off["e2"]:off["e2"] + H, :H].set(params["e2_w"])
    s = s.at[off["e3"]:off["e3"] + H, :L].set(params["e3_w"])
    s = s.at[off["d1"]:off["d1"] + L, :H].set(params["d11_w"])
    s = s.at[off["d1"]:off["d1"] + L, H:H2].set(params["d21_w"])
    s = s.at[off["d2"]:off["d2"] + H, :H].set(params["d12_w"])
    s = s.at[off["d2"] + H:off["d2"] + H2, H:H2].set(params["d22_w"])
    s = s.at[off["d3"]:off["d3"] + H, :n].set(params["d13_w"])
    s = s.at[off["d3"] + H:off["d3"] + H2, NP:NP + n].set(params["d23_w"])
    b = off["bias"]
    s = s.at[b + 0, :H].set(params["e1_b"])
    s = s.at[b + 1, :H].set(params["e2_b"])
    s = s.at[b + 2, :L].set(params["e3_b"])
    s = s.at[b + 3, :H].set(params["d11_b"])
    s = s.at[b + 3, H:H2].set(params["d21_b"])
    s = s.at[b + 4, :H].set(params["d12_b"])
    s = s.at[b + 4, H:H2].set(params["d22_b"])
    s = s.at[b + 5, :n].set(params["d13_b"])
    s = s.at[b + 5, NP:NP + n].set(params["d23_b"])

    meta = dict(n=n, NP=NP, H=H, LP=LP, H2=H2, R=R, C=C, off=off)
    return s, meta


# --------------------------------------------------------------------------
# Fused kernel (one batch tile of TB windows per grid step)
# --------------------------------------------------------------------------
def _make_kernel(meta):
    NP, H, LP, H2 = meta["NP"], meta["H"], meta["LP"], meta["H2"]
    off = meta["off"]
    brow = off["bias"]

    def kernel(g_ref, slab_ref, out_ref):
        def lin(x, roff, rows, cols, bidx, act):
            # Read each weight/bias at the point of use (short live ranges).
            w = slab_ref[roff:roff + rows, 0:cols]
            b = slab_ref[brow + bidx:brow + bidx + 1, 0:cols]
            y = jnp.dot(x, w, preferred_element_type=jnp.float32) + b
            return act(y)

        relu = lambda v: jnp.maximum(v, 0.0)

        def encoder(x):                         # (TB, NP) -> (TB, LP)
            h = lin(x, off["e1"], NP, H, 0, relu)
            h = lin(h, off["e2"], H, H, 1, relu)
            return lin(h, off["e3"], H, LP, 2, relu)

        def wide_decoder(z):                    # (TB, LP) -> (TB, 2*NP)
            h = lin(z, off["d1"], LP, H2, 3, relu)
            h = lin(h, off["d2"], H2, H2, 4, relu)
            return lin(h, off["d3"], H2, 2 * NP, 5, jax.nn.sigmoid)

        x = g_ref[...]                          # (TB, NP), lane-dense
        z = encoder(x)
        w1 = wide_decoder(z)                    # [ae1_pad | ae2_pad]
        ae1 = w1[:, :NP]
        w2 = wide_decoder(encoder(ae1))
        ae2ae1 = w2[:, NP:]
        # Single lane-dense (TB, 3*NP) store: [ae1 | ae2 | ae2ae1].
        out_ref[...] = jnp.concatenate([w1, ae2ae1], axis=1)

    return kernel


# --------------------------------------------------------------------------
# Wrappers
# --------------------------------------------------------------------------
def usad_forward_batched(g, params, *, tile_b=128):
    """Batched USAD forward.  g: (B, n_window, feats) or (B, n).
    Returns (ae1, ae2, ae2ae1), each (B, n)."""
    slab, meta = pack_params(params)
    n, NP = meta["n"], meta["NP"]
    B = g.shape[0]
    g2 = jnp.reshape(g, (B, n)).astype(jnp.float32)

    TB = min(tile_b, _round_up(B, 8))
    B_pad = _round_up(B, TB)
    g_pad = jnp.pad(g2, ((0, B_pad - B), (0, NP - n)))

    kernel = _make_kernel(meta)
    out = pl.pallas_call(
        kernel,
        out_shape=jax.ShapeDtypeStruct((B_pad, 3 * NP), jnp.float32),
        grid=(B_pad // TB,),
        in_specs=[
            pl.BlockSpec((TB, NP), lambda i: (i, 0)),
            # Whole parameter slab: same block every step -> stays in VMEM.
            pl.BlockSpec((meta["R"], meta["C"]), lambda i: (0, 0)),
        ],
        out_specs=pl.BlockSpec((TB, 3 * NP), lambda i: (i, 0)),
        compiler_params=pltpu.CompilerParams(
            dimension_semantics=("parallel",)),
    )(g_pad, slab)

    ae1 = out[:B, :n]
    ae2 = out[:B, NP:NP + n]
    ae2ae1 = out[:B, 2 * NP:2 * NP + n]
    return ae1, ae2, ae2ae1


def usad_forward(g, params):
    """Single-window forward matching torch USAD.forward: g (n_window, feats)
    -> three (n,) vectors."""
    ae1, ae2, ae2ae1 = usad_forward_batched(g[None, ...], params, tile_b=8)
    return ae1[0], ae2[0], ae2ae1[0]


# --------------------------------------------------------------------------
# Pure-JAX reference (unfused, unpacked params) for validation
# --------------------------------------------------------------------------
def reference_forward_batched(g, params):
    B = g.shape[0]
    n = params["e1_w"].shape[0]
    x = jnp.reshape(g, (B, n)).astype(jnp.float32)
    P = jax.lax.Precision.HIGHEST

    def lin(x, w, b):
        return jnp.dot(x, w, precision=P) + b

    def encoder(x):
        h = jax.nn.relu(lin(x, params["e1_w"], params["e1_b"]))
        h = jax.nn.relu(lin(h, params["e2_w"], params["e2_b"]))
        return jax.nn.relu(lin(h, params["e3_w"], params["e3_b"]))

    def dec(x, i):
        h = jax.nn.relu(lin(x, params[f"d{i}1_w"], params[f"d{i}1_b"]))
        h = jax.nn.relu(lin(h, params[f"d{i}2_w"], params[f"d{i}2_b"]))
        return jax.nn.sigmoid(lin(h, params[f"d{i}3_w"], params[f"d{i}3_b"]))

    z = encoder(x)
    ae1 = dec(z, 1)
    ae2 = dec(z, 2)
    ae2ae1 = dec(encoder(ae1), 2)
    return ae1, ae2, ae2ae1


if __name__ == "__main__":
    feats = 4                        # n_feats
    B = 200                          # windows per call (pads to 2 x 128-row tiles)
    key = jax.random.PRNGKey(0)
    kx, kp = jax.random.split(key)
    g = jax.random.normal(kx, (B, N_WINDOW, feats), dtype=jnp.float32)
    params = init_params(kp, feats)

    ae1, ae2, ae2ae1 = usad_forward_batched(g, params)
    ae1, ae2, ae2ae1 = jax.block_until_ready((ae1, ae2, ae2ae1))

    n = feats * N_WINDOW
    assert ae1.shape == (B, n) and ae2.shape == (B, n) and ae2ae1.shape == (B, n)

    r1, r2, r3 = reference_forward_batched(g, params)
    err = max(float(jnp.max(jnp.abs(ae1 - r1))),
              float(jnp.max(jnp.abs(ae2 - r2))),
              float(jnp.max(jnp.abs(ae2ae1 - r3))))
    assert err < 2e-4, f"batched mismatch vs reference: {err}"

    # Single-window path (torch USAD.forward semantics).
    s1, s2, s3 = usad_forward(g[0], params)
    s1, s2, s3 = jax.block_until_ready((s1, s2, s3))
    assert s1.shape == (n,) and s2.shape == (n,) and s3.shape == (n,)
    err1 = max(float(jnp.max(jnp.abs(s1 - r1[0]))),
               float(jnp.max(jnp.abs(s2 - r2[0]))),
               float(jnp.max(jnp.abs(s3 - r3[0]))))
    assert err1 < 2e-4, f"single-window mismatch vs reference: {err1}"

    print("KERNEL_OK")
</pallas_src>

<mosaic_0001>
module attributes {stable_mosaic.version = 11 : i64} {
  func.func @kernel(%arg0: i32, %arg1: memref<128x128xf32, #tpu.memory_space<vmem>>, %arg2: memref<240x256xf32, #tpu.memory_space<vmem>>, %arg3: memref<128x384xf32, #tpu.memory_space<vmem>>) attributes {dimension_semantics = [#tpu.dimension_semantics<parallel>], iteration_bounds = array<i64: 2>, scalar_prefetch = 0 : i64, scratch_operands = 0 : i64, tpu.core_type = #tpu.core_type<tc>, window_params = [{transform_indices = @transform_0, window_bounds = array<i64: 128, 128>}, {pipeline_mode = #tpu.pipeline_mode<synchronous>, transform_indices = @transform_1, window_bounds = array<i64: 240, 256>}, {transform_indices = @transform_2, window_bounds = array<i64: 128, 384>}]} {
    %c0 = arith.constant 0 : index
    %c0_0 = arith.constant 0 : index
    %0 = vector.load %arg1[%c0, %c0_0] : memref<128x128xf32, #tpu.memory_space<vmem>>, vector<128x128xf32>
    %c0_1 = arith.constant 0 : index
    %c0_2 = arith.constant 0 : index
    %1 = vector.load %arg2[%c0_1, %c0_2] : memref<240x256xf32, #tpu.memory_space<vmem>>, vector<128x16xf32>
    %c232 = arith.constant 232 : index
    %c0_3 = arith.constant 0 : index
    %2 = vector.load %arg2[%c232, %c0_3] : memref<240x256xf32, #tpu.memory_space<vmem>>, vector<1x16xf32>
    %cst = arith.constant dense<0.000000e+00> : vector<128x16xf32>
    %3 = tpu.matmul %0, %1, %cst {dimension_numbers = #tpu.dot_dimension_numbers<[1], [0], [0], [1], [0, 0, 1, 1], [], []>} : vector<128x128xf32>, vector<128x16xf32>, vector<128x16xf32> -> vector<128x16xf32>
    %4 = vector.broadcast %2 : vector<1x16xf32> to vector<128x16xf32>
    %5 = arith.addf %3, %4 : vector<128x16xf32>
    %cst_4 = arith.constant 0.000000e+00 : f32
    %6 = vector.broadcast %cst_4 : f32 to vector<128x16xf32>
    %7 = arith.maximumf %5, %6 : vector<128x16xf32>
    %c128 = arith.constant 128 : index
    %c0_5 = arith.constant 0 : index
    %8 = vector.load %arg2[%c128, %c0_5] : memref<240x256xf32, #tpu.memory_space<vmem>>, vector<16x16xf32>
    %c233 = arith.constant 233 : index
    %c0_6 = arith.constant 0 : index
    %9 = vector.load %arg2[%c233, %c0_6] : memref<240x256xf32, #tpu.memory_space<vmem>>, vector<1x16xf32>
    %cst_7 = arith.constant dense<0.000000e+00> : vector<128x16xf32>
    %10 = tpu.matmul %7, %8, %cst_7 {dimension_numbers = #tpu.dot_dimension_numbers<[1], [0], [0], [1], [0, 0, 1, 1], [], []>} : vector<128x16xf32>, vector<16x16xf32>, vector<128x16xf32> -> vector<128x16xf32>
    %11 = vector.broadcast %9 : vector<1x16xf32> to vector<128x16xf32>
    %12 = arith.addf %10, %11 : vector<128x16xf32>
    %cst_8 = arith.constant 0.000000e+00 : f32
    %13 = vector.broadcast %cst_8 : f32 to vector<128x16xf32>
    %14 = arith.maximumf %12, %13 : vector<128x16xf32>
    %c144 = arith.constant 144 : index
    %c0_9 = arith.constant 0 : index
    %15 = vector.load %arg2[%c144, %c0_9] : memref<240x256xf32, #tpu.memory_space<vmem>>, vector<16x8xf32>
    %c234 = arith.constant 234 : index
    %c0_10 = arith.constant 0 : index
    %16 = vector.load %arg2[%c234, %c0_10] : memref<240x256xf32, #tpu.memory_space<vmem>>, vector<1x8xf32>
    %cst_11 = arith.constant dense<0.000000e+00> : vector<128x8xf32>
    %17 = tpu.matmul %14, %15, %cst_11 {dimension_numbers = #tpu.dot_dimension_numbers<[1], [0], [0], [1], [0, 0, 1, 1], [], []>} : vector<128x16xf32>, vector<16x8xf32>, vector<128x8xf32> -> vector<128x8xf32>
    %18 = vector.broadcast %16 : vector<1x8xf32> to vector<128x8xf32>
    %19 = arith.addf %17, %18 : vector<128x8xf32>
    %cst_12 = arith.constant 0.000000e+00 : f32
    %20 = vector.broadcast %cst_12 : f32 to vector<128x8xf32>
    %21 = arith.maximumf %19, %20 : vector<128x8xf32>
    %c160 = arith.constant 160 : index
    %c0_13 = arith.constant 0 : index
    %22 = vector.load %arg2[%c160, %c0_13] : memref<240x256xf32, #tpu.memory_space<vmem>>, vector<8x32xf32>
    %c235 = arith.constant 235 : index
    %c0_14 = arith.constant 0 : index
    %23 = vector.load %arg2[%c235, %c0_14] : memref<240x256xf32, #tpu.memory_space<vmem>>, vector<1x32xf32>
    %cst_15 = arith.constant dense<0.000000e+00> : vector<128x32xf32>
    %24 = tpu.matmul %21, %22, %cst_15 {dimension_numbers = #tpu.dot_dimension_numbers<[1], [0], [0], [1], [0, 0, 1, 1], [], []>} : vector<128x8xf32>, vector<8x32xf32>, vector<128x32xf32> -> vector<128x32xf32>
    %25 = vector.broadcast %23 : vector<1x32xf32> to vector<128x32xf32>
    %26 = arith.addf %24, %25 : vector<128x32xf32>
    %cst_16 = arith.constant 0.000000e+00 : f32
    %27 = vector.broadcast %cst_16 : f32 to vector<128x32xf32>
    %28 = arith.maximumf %26, %27 : vector<128x32xf32>
    %c168 = arith.constant 168 : index
    %c0_17 = arith.constant 0 : index
    %29 = vector.load %arg2[%c168, %c0_17] : memref<240x256xf32, #tpu.memory_space<vmem>>, vector<32x32xf32>
    %c236 = arith.constant 236 : index
    %c0_18 = arith.constant 0 : index
    %30 = vector.load %arg2[%c236, %c0_18] : memref<240x256xf32, #tpu.memory_space<vmem>>, vector<1x32xf32>
    %cst_19 = arith.constant dense<0.000000e+00> : vector<128x32xf32>
    %31 = tpu.matmul %28, %29, %cst_19 {dimension_numbers = #tpu.dot_dimension_numbers<[1], [0], [0], [1], [0, 0, 1, 1], [], []>} : vector<128x32xf32>, vector<32x32xf32>, vector<128x32xf32> -> vector<128x32xf32>
    %32 = vector.broadcast %30 : vector<1x32xf32> to vector<128x32xf32>
    %33 = arith.addf %31, %32 : vector<128x32xf32>
    %cst_20 = arith.constant 0.000000e+00 : f32
    %34 = vector.broadcast %cst_20 : f32 to vector<128x32xf32>
    %35 = arith.maximumf %33, %34 : vector<128x32xf32>
    %c200 = arith.constant 200 : index
    %c0_21 = arith.constant 0 : index
    %36 = vector.load %arg2[%c200, %c0_21] : memref<240x256xf32, #tpu.memory_space<vmem>>, vector<32x256xf32>
    %c237 = arith.constant 237 : index
    %c0_22 = arith.constant 0 : index
    %37 = vector.load %arg2[%c237, %c0_22] : memref<240x256xf32, #tpu.memory_space<vmem>>, vector<1x256xf32>
    %cst_23 = arith.constant dense<0.000000e+00> : vector<128x256xf32>
    %38 = tpu.matmul %35, %36, %cst_23 {dimension_numbers = #tpu.dot_dimension_numbers<[1], [0], [0], [1], [0, 0, 1, 1], [], []>} : vector<128x32xf32>, vector<32x256xf32>, vector<128x256xf32> -> vector<128x256xf32>
    %39 = vector.broadcast %37 : vector<1x256xf32> to vector<128x256xf32>
    %40 = arith.addf %38, %39 : vector<128x256xf32>
    %41 = arith.negf %40 : vector<128x256xf32>
    %42 = math.exp %41 : vector<128x256xf32>
    %cst_24 = arith.constant 1.000000e+00 : f32
    %43 = vector.broadcast %cst_24 : f32 to vector<128x256xf32>
    %44 = arith.addf %43, %42 : vector<128x256xf32>
    %45 = arith.divf %43, %44 : vector<128x256xf32>
    %46 = vector.extract_strided_slice %45 {offsets = [0, 0], sizes = [128, 128], strides = [1, 1]} : vector<128x256xf32> to vector<128x128xf32>
    %c0_25 = arith.constant 0 : index
    %c0_26 = arith.constant 0 : index
    %47 = vector.load %arg2[%c0_25, %c0_26] : memref<240x256xf32, #tpu.memory_space<vmem>>, vector<128x16xf32>
    %c232_27 = arith.constant 232 : index
    %c0_28 = arith.constant 0 : index
    %48 = vector.load %arg2[%c232_27, %c0_28] : memref<240x256xf32, #tpu.memory_space<vmem>>, vector<1x16xf32>
    %cst_29 = arith.constant dense<0.000000e+00> : vector<128x16xf32>
    %49 = tpu.matmul %46, %47, %cst_29 {dimension_numbers = #tpu.dot_dimension_numbers<[1], [0], [0], [1], [0, 0, 1, 1], [], []>} : vector<128x128xf32>, vector<128x16xf32>, vector<128x16xf32> -> vector<128x16xf32>
    %50 = vector.broadcast %48 : vector<1x16xf32> to vector<128x16xf32>
    %51 = arith.addf %49, %50 : vector<128x16xf32>
    %cst_30 = arith.constant 0.000000e+00 : f32
    %52 = vector.broadcast %cst_30 : f32 to vector<128x16xf32>
    %53 = arith.maximumf %51, %52 : vector<128x16xf32>
    %c128_31 = arith.constant 128 : index
    %c0_32 = arith.constant 0 : index
    %54 = vector.load %arg2[%c128_31, %c0_32] : memref<240x256xf32, #tpu.memory_space<vmem>>, vector<16x16xf32>
    %c233_33 = arith.constant 233 : index
    %c0_34 = arith.constant 0 : index
    %55 = vector.load %arg2[%c233_33, %c0_34] : memref<240x256xf32, #tpu.memory_space<vmem>>, vector<1x16xf32>
    %cst_35 = arith.constant dense<0.000000e+00> : vector<128x16xf32>
    %56 = tpu.matmul %53, %54, %cst_35 {dimension_numbers = #tpu.dot_dimension_numbers<[1], [0], [0], [1], [0, 0, 1, 1], [], []>} : vector<128x16xf32>, vector<16x16xf32>, vector<128x16xf32> -> vector<128x16xf32>
    %57 = vector.broadcast %55 : vector<1x16xf32> to vector<128x16xf32>
    %58 = arith.addf %56, %57 : vector<128x16xf32>
    %cst_36 = arith.constant 0.000000e+00 : f32
    %59 = vector.broadcast %cst_36 : f32 to vector<128x16xf32>
    %60 = arith.maximumf %58, %59 : vector<128x16xf32>
    %c144_37 = arith.constant 144 : index
    %c0_38 = arith.constant 0 : index
    %61 = vector.load %arg2[%c144_37, %c0_38] : memref<240x256xf32, #tpu.memory_space<vmem>>, vector<16x8xf32>
    %c234_39 = arith.constant 234 : index
    %c0_40 = arith.constant 0 : index
    %62 = vector.load %arg2[%c234_39, %c0_40] : memref<240x256xf32, #tpu.memory_space<vmem>>, vector<1x8xf32>
    %cst_41 = arith.constant dense<0.000000e+00> : vector<128x8xf32>
    %63 = tpu.matmul %60, %61, %cst_41 {dimension_numbers = #tpu.dot_dimension_numbers<[1], [0], [0], [1], [0, 0, 1, 1], [], []>} : vector<128x16xf32>, vector<16x8xf32>, vector<128x8xf32> -> vector<128x8xf32>
    %64 = vector.broadcast %62 : vector<1x8xf32> to vector<128x8xf32>
    %65 = arith.addf %63, %64 : vector<128x8xf32>
    %cst_42 = arith.constant 0.000000e+00 : f32
    %66 = vector.broadcast %cst_42 : f32 to vector<128x8xf32>
    %67 = arith.maximumf %65, %66 : vector<128x8xf32>
    %c160_43 = arith.constant 160 : index
    %c0_44 = arith.constant 0 : index
    %68 = vector.load %arg2[%c160_43, %c0_44] : memref<240x256xf32, #tpu.memory_space<vmem>>, vector<8x32xf32>
    %c235_45 = arith.constant 235 : index
    %c0_46 = arith.constant 0 : index
    %69 = vector.load %arg2[%c235_45, %c0_46] : memref<240x256xf32, #tpu.memory_space<vmem>>, vector<1x32xf32>
    %cst_47 = arith.constant dense<0.000000e+00> : vector<128x32xf32>
    %70 = tpu.matmul %67, %68, %cst_47 {dimension_numbers = #tpu.dot_dimension_numbers<[1], [0], [0], [1], [0, 0, 1, 1], [], []>} : vector<128x8xf32>, vector<8x32xf32>, vector<128x32xf32> -> vector<128x32xf32>
    %71 = vector.broadcast %69 : vector<1x32xf32> to vector<128x32xf32>
    %72 = arith.addf %70, %71 : vector<128x32xf32>
    %cst_48 = arith.constant 0.000000e+00 : f32
    %73 = vector.broadcast %cst_48 : f32 to vector<128x32xf32>
    %74 = arith.maximumf %72, %73 : vector<128x32xf32>
    %c168_49 = arith.constant 168 : index
    %c0_50 = arith.constant 0 : index
    %75 = vector.load %arg2[%c168_49, %c0_50] : memref<240x256xf32, #tpu.memory_space<vmem>>, vector<32x32xf32>
    %c236_51 = arith.constant 236 : index
    %c0_52 = arith.constant 0 : index
    %76 = vector.load %arg2[%c236_51, %c0_52] : memref<240x256xf32, #tpu.memory_space<vmem>>, vector<1x32xf32>
    %cst_53 = arith.constant dense<0.000000e+00> : vector<128x32xf32>
    %77 = tpu.matmul %74, %75, %cst_53 {dimension_numbers = #tpu.dot_dimension_numbers<[1], [0], [0], [1], [0, 0, 1, 1], [], []>} : vector<128x32xf32>, vector<32x32xf32>, vector<128x32xf32> -> vector<128x32xf32>
    %78 = vector.broadcast %76 : vector<1x32xf32> to vector<128x32xf32>
    %79 = arith.addf %77, %78 : vector<128x32xf32>
    %cst_54 = arith.constant 0.000000e+00 : f32
    %80 = vector.broadcast %cst_54 : f32 to vector<128x32xf32>
    %81 = arith.maximumf %79, %80 : vector<128x32xf32>
    %c200_55 = arith.constant 200 : index
    %c0_56 = arith.constant 0 : index
    %82 = vector.load %arg2[%c200_55, %c0_56] : memref<240x256xf32, #tpu.memory_space<vmem>>, vector<32x256xf32>
    %c237_57 = arith.constant 237 : index
    %c0_58 = arith.constant 0 : index
    %83 = vector.load %arg2[%c237_57, %c0_58] : memref<240x256xf32, #tpu.memory_space<vmem>>, vector<1x256xf32>
    %cst_59 = arith.constant dense<0.000000e+00> : vector<128x256xf32>
    %84 = tpu.matmul %81, %82, %cst_59 {dimension_numbers = #tpu.dot_dimension_numbers<[1], [0], [0], [1], [0, 0, 1, 1], [], []>} : vector<128x32xf32>, vector<32x256xf32>, vector<128x256xf32> -> vector<128x256xf32>
    %85 = vector.broadcast %83 : vector<1x256xf32> to vector<128x256xf32>
    %86 = arith.addf %84, %85 : vector<128x256xf32>
    %87 = arith.negf %86 : vector<128x256xf32>
    %88 = math.exp %87 : vector<128x256xf32>
    %cst_60 = arith.constant 1.000000e+00 : f32
    %89 = vector.broadcast %cst_60 : f32 to vector<128x256xf32>
    %90 = arith.addf %89, %88 : vector<128x256xf32>
    %91 = arith.divf %89, %90 : vector<128x256xf32>
    %92 = vector.extract_strided_slice %91 {offsets = [0, 128], sizes = [128, 128], strides = [1, 1]} : vector<128x256xf32> to vector<128x128xf32>
    %93 = tpu.concatenate %45, %92 in 1 : vector<128x256xf32>, vector<128x128xf32> -> vector<128x384xf32>
    %c0_61 = arith.constant 0 : index
    %c0_62 = arith.constant 0 : index
    %94 = vector.load %arg3[%c0_61, %c0_62] : memref<128x384xf32, #tpu.memory_space<vmem>>, vector<128x384xf32>
    tpu.vector_store %arg3[%c0_61, %c0_62], %93 {strides = array<i32>} : memref<128x384xf32, #tpu.memory_space<vmem>>, vector<128x384xf32>,
    return
  }
  func.func @transform_0(%arg0: i32) -> (i32, i32) {
    %c0_i32 = arith.constant 0 : i32
    %c0_i32_0 = arith.constant 0 : i32
    return %arg0, %c0_i32 : i32, i32
  }
  func.func @transform_1(%arg0: i32) -> (i32, i32) {
    %c0_i32 = arith.constant 0 : i32
    %c0_i32_0 = arith.constant 0 : i32
    %c0_i32_1 = arith.constant 0 : i32
    return %c0_i32, %c0_i32_0 : i32, i32
  }
  func.func @transform_2(%arg0: i32) -> (i32, i32) {
    %c0_i32 = arith.constant 0 : i32
    %c0_i32_0 = arith.constant 0 : i32
    return %arg0, %c0_i32 : i32, i32
  }
}

</mosaic_0001>

<llo_original>
// kernel: tpu_custom_call.1
$region0: #{tpu_custom_call.1}
  #allocation0 [shape = 'u32[]', space=smem, size = 0x4, offset = 0x4, fixed_abs, tag = 'smem constant byte address 0x4 - core index']
  #allocation1 [shape = 'u32[144,128]{1,0:T(1,128)}', space=vmem, size = 0x12000, scoped, tag = 'internal scratch']
  %s0 = inlined_call_operand.hbm [shape: f32[256,128], index: 0, kind: input, shape index: {}]
  %s1 = inlined_call_operand.hbm [shape: f32[240,256], index: 1, kind: input, shape index: {}]
  %s2 = inlined_call_operand.hbm [shape: f32[256,384], index: 2, kind: output, shape index: {}]
  %s3 = sld [smem:[#allocation0]]
  $region49: #{tpu_custom_call.1} parent=0
    _
  %s5 = ssub.s32 1, %s3
  %s6 = scalar_select 0, %s5, %s3
  $region1: #{tpu_custom_call.1} parent=0
    #allocation2 [shape = 'u8[131072]{0}', space=vmem, size = 0x20000, scoped, tag = 'input window, operand 0']
    #allocation3 [shape = 's32[2]{0}', space=sflag, size = 0x8, scoped, tag = 'scoped memory for tpu_custom_call.1']
    #allocation4 [shape = 's32[2]{0}', space=sflag, size = 0x8, scoped, tag = 'scoped memory for tpu_custom_call.1']
    #allocation5 [shape = 'u8[245760]{0}', space=vmem, size = 0x3c000, scoped, tag = 'input window, operand 1, single buffered']
    #allocation6 [shape = 's32[1]{0}', space=sflag, size = 0x4, scoped, tag = 'scoped memory for tpu_custom_call.1']
    #allocation7 [shape = 'u8[393216]{0}', space=vmem, size = 0x60000, scoped, tag = 'output window, operand 0']
    %7 = vsyncpa [#allocation3], 0
    %s8 = scalar_lea.sflag [#allocation3], 1
    %9 = vsyncpa %s8, 0
    %10 = vsyncpa [#allocation6], 0
    %11 = vsyncpa [#allocation4], 0
    %s12 = scalar_lea.sflag [#allocation4], 1
    %13 = vsyncpa %s12, 0
    loop: start=0, step=1, limit=4
    $region2: #{tpu_custom_call.1} parent=1 // loop_pre_header
      _
    $region3: #{tpu_custom_call.1} parent=1 // loop_header
      %s15 = sphi 0, %s19
      %p16 = scmp.ge.s32.totalorder %s15, 4
      %s25 = sphi 0, %s27
      %s28 = sphi 0, %s25
      %s29 = sphi 0, %s28
      %s45 = sphi 0, %s29
      %s49 = sphi 0, %s49
      %s51 = sphi 0, %s49
      %s52 = sphi 0, %s51
      %s66 = sphi 0, %s52
      %s72 = sphi 0, %s74
      %s75 = sphi 0, %s72
      %s76 = sphi 0, %s75
      %s92 = sphi 0, %s76
    $region4: #{tpu_custom_call.1} parent=1 // loop_header_branch
      %18 = sbr.rel (%p16) target = $region8
    $region5: #{tpu_custom_call.1} parent=1 // loop_body
      %s20 = ssub.s32 %s15, 1
      %s21 = ssub.s32 %s15, 2
      %s22 = sadd.s32 %s15, 1
      %s23 = ssub.s32 %s15, %s22
      %p24 = scmp.eq.s32.totalorder %s23, 0
      %s26 = sadd.s32 %s25, 1
      %s27 = scalar_select %p24, %s25, %s26
      %p30 = pneg %p24
      %p31 = scmp.eq.s32.totalorder %s15, 1
      %p32 = por %p30, %p31
      %p33 = scmp.ne.s32.totalorder %s25, %s28
      %p34 = scmp.eq.s32.totalorder %s15, 0
      %p35 = por %p33, %p34
      %p36 = scmp.ne.s32.totalorder %s25, %s28
      %p37 = scmp.eq.s32.totalorder %s20, 1
      %p38 = por %p36, %p37
      %p39 = scmp.ne.s32.totalorder %s28, %s29
      %p40 = scmp.eq.s32.totalorder %s20, 0
      %p41 = por %p39, %p40
      %p42 = scmp.ne.s32.totalorder %s28, %s29
      %p43 = scmp.eq.s32.totalorder %s21, 1
      %p44 = por %p42, %p43
      %p46 = scmp.ne.s32.totalorder %s29, %s45
      %p47 = scmp.eq.s32.totalorder %s21, 0
      %p48 = por %p46, %p47
      %s50 = sadd.s32 %s49, 1
      %p53 = scmp.eq.s32.totalorder %s15, 1
      %p54 = scmp.ne.s32.totalorder %s49, %s51
      %p55 = scmp.eq.s32.totalorder %s15, 0
      %p56 = por %p54, %p55
      %p57 = scmp.ne.s32.totalorder %s49, %s51
      %p58 = scmp.eq.s32.totalorder %s20, 1
      %p59 = por %p57, %p58
      %p60 = scmp.ne.s32.totalorder %s51, %s52
      %p61 = scmp.eq.s32.totalorder %s20, 0
      %p62 = por %p60, %p61
      %p63 = scmp.ne.s32.totalorder %s51, %s52
      %p64 = scmp.eq.s32.totalorder %s21, 1
      %p65 = por %p63, %p64
      %p67 = scmp.ne.s32.totalorder %s52, %s66
      %p68 = scmp.eq.s32.totalorder %s21, 0
      %p69 = por %p67, %p68
      %s70 = ssub.s32 %s15, %s22
      %p71 = scmp.eq.s32.totalorder %s70, 0
      %s73 = sadd.s32 %s72, 1
      %s74 = scalar_select %p71, %s72, %s73
      %p77 = pneg %p71
      %p78 = scmp.eq.s32.totalorder %s15, 1
      %p79 = por %p77, %p78
      %p80 = scmp.ne.s32.totalorder %s72, %s75
      %p81 = scmp.eq.s32.totalorder %s15, 0
      %p82 = por %p80, %p81
      %p83 = scmp.ne.s32.totalorder %s72, %s75
      %p84 = scmp.eq.s32.totalorder %s20, 1
      %p85 = por %p83, %p84
      %p86 = scmp.ne.s32.totalorder %s75, %s76
      %p87 = scmp.eq.s32.totalorder %s20, 0
      %p88 = por %p86, %p87
      %p89 = scmp.ne.s32.totalorder %s75, %s76
      %p90 = scmp.eq.s32.totalorder %s21, 1
      %p91 = por %p89, %p90
      %p93 = scmp.ne.s32.totalorder %s76, %s92
      %p94 = scmp.eq.s32.totalorder %s21, 0
      %p95 = por %p93, %p94
      %p96 = scmp.le.s32.totalorder 1, %s15
      %p97 = scmp.lt.s32.totalorder %s15, 3
      %p98 = pnand %p96, %p97
      %p99 = pneg %p98
      // Predicated region
      $region9: #{tpu_custom_call.1} parent=5 // pred_check
        _
      $region10: #{tpu_custom_call.1} parent=5 // pred_check_branch
        %101 = sbr.rel (%p98) target = $region12
      $region11: #{tpu_custom_call.1} parent=5 // pred_region
        %s102 = ssub.s32 %s15, 1
        // Predicated region
        $region13: #{tpu_custom_call.1} parent=11 // pred_check
          %p103 = pneg %p62
        $region14: #{tpu_custom_call.1} parent=11 // pred_check_branch
          %105 = sbr.rel (%p103) target = $region16
        $region15: #{tpu_custom_call.1} parent=11 // pred_region
          %s107 = ssub.s32 7680, 7680
          %108 = vsyncadd [#allocation6], %s107
          %s109 = sshll.u32 [#allocation5], 4
          %s110 = int_to_ptr.vmem [resolvable:$true] %s109
          %115 = dma.hbm_to_vmem [thread:$0]  %s1, 7680, %s110, [#allocation6], 256, 256, 16
        $region16: #{tpu_custom_call.1} parent=11 // pred_fallthru
          _
      $region12: #{tpu_custom_call.1} parent=5 // pred_fallthru
        _
      %p116 = scmp.lt.s32.totalorder %s15, 2
      // Predicated region
      $region17: #{tpu_custom_call.1} parent=5 // pred_check
        %p117 = pneg %p116
      $region18: #{tpu_custom_call.1} parent=5 // pred_check_branch
        %119 = sbr.rel (%p117) target = $region20
      $region19: #{tpu_custom_call.1} parent=5 // pred_region
        // Predicated region
        $region21: #{tpu_custom_call.1} parent=19 // pred_check
          %p120 = pneg %p35
        $region22: #{tpu_custom_call.1} parent=19 // pred_check_branch
          %122 = sbr.rel (%p120) target = $region24
        $region23: #{tpu_custom_call.1} parent=19 // pred_region
          %s123 = sand.u32 %s25, 1
          %s124 = scalar_lea.sflag [#allocation3], %s123
          %s125 = sand.u32 %s25, 1
          %s126 = smul.addr %s125, 128
          %s127 = scalar_lea.vmem [#allocation2], %s126
          %s128 = smul.u32 16, %s15
          %s130 = ssub.s32 2048, 2048
          %131 = vsyncadd %s124, %s130
          %s132 = smul.addr %s128, 128
          %s133 = scalar_lea.hbm %s0, %s132
          %s134 = sshll.u32 %s127, 4
          %s135 = int_to_ptr.vmem [resolvable:$true] %s134
          %140 = dma.hbm_to_vmem [thread:$0]  %s133, 2048, %s135, %s124, 128, 128, 8
        $region24: #{tpu_custom_call.1} parent=19 // pred_fallthru
          _
      $region20: #{tpu_custom_call.1} parent=5 // pred_fallthru
        _
      %p141 = scmp.le.s32.totalorder 1, %s15
      %p142 = scmp.lt.s32.totalorder %s15, 3
      %p143 = pnand %p141, %p142
      %p144 = pneg %p143
      // Predicated region
      $region25: #{tpu_custom_call.1} parent=5 // pred_check
        _
      $region26: #{tpu_custom_call.1} parent=5 // pred_check_branch
        %146 = sbr.rel (%p143) target = $region28
      $region27: #{tpu_custom_call.1} parent=5 // pred_region
        %s147 = ssub.s32 %s15, 1
        %s148 = sand.u32 %s28, 1
        %s149 = scalar_lea.sflag [#allocation3], %s148
        %s150 = sand.u32 %s28, 1
        %s151 = smul.addr %s150, 128
        %s152 = scalar_lea.vmem [#allocation2], %s151
        // Predicated region
        $region29: #{tpu_custom_call.1} parent=27 // pred_check
          %p153 = pneg %p41
        $region30: #{tpu_custom_call.1} parent=27 // pred_check_branch
          %155 = sbr.rel (%p153) target = $region32
        $region31: #{tpu_custom_call.1} parent=27 // pred_region
          %156 = dma.done %s149, 2048
        $region32: #{tpu_custom_call.1} parent=27 // pred_fallthru
          _
        // Predicated region
        $region33: #{tpu_custom_call.1} parent=27 // pred_check
          %p157 = pneg %p62
        $region34: #{tpu_custom_call.1} parent=27 // pred_check_branch
          %159 = sbr.rel (%p157) target = $region36
        $region35: #{tpu_custom_call.1} parent=27 // pred_region
          %160 = dma.done [#allocation6], 7680
        $region36: #{tpu_custom_call.1} parent=27 // pred_fallthru
          _
        %s161 = sand.u32 %s28, 1
        %s162 = scalar_lea.sflag [#allocation3], %s161
        %s163 = sand.u32 %s28, 1
        %s164 = smul.addr %s163, 128
        %s165 = scalar_lea.vmem [#allocation2], %s164
        %p166 = pneg %p41
        %p167 = pneg %p38
        %p168 = pneg %p62
        %p169 = pneg %p59
        %p170 = pneg %p88
        %p171 = pneg %p85
        %s172 = sand.u32 %s75, 1
        %s173 = scalar_lea.sflag [#allocation4], %s172
        %s174 = sand.u32 %s75, 1
        %s175 = smul.addr %s174, 384
        %s176 = scalar_lea.vmem [#allocation7], %s175
        %s177 = smul.u32 16, %s20
        %s178 = smul.u32 16, %s20
        %v179 = vld [vmem:[%s152] sm:$0xff]
        %v180 = vld [vmem:[%s152 + $0x8] sm:$0xff]
        %v181 = vld [vmem:[%s152 + $0x10] sm:$0xff]
        %v182 = vld [vmem:[%s152 + $0x18] sm:$0xff]
        %v183 = vld [vmem:[%s152 + $0x20] sm:$0xff]
        %v184 = vld [vmem:[%s152 + $0x28] sm:$0xff]
        %v185 = vld [vmem:[%s152 + $0x30] sm:$0xff]
        %v186 = vld [vmem:[%s152 + $0x38] sm:$0xff]
        %v187 = vld [vmem:[%s152 + $0x40] sm:$0xff]
        %v188 = vld [vmem:[%s152 + $0x48] sm:$0xff]
        %v189 = vld [vmem:[%s152 + $0x50] sm:$0xff]
        %v190 = vld [vmem:[%s152 + $0x58] sm:$0xff]
        %v191 = vld [vmem:[%s152 + $0x60] sm:$0xff]
        %v192 = vld [vmem:[%s152 + $0x68] sm:$0xff]
        %v193 = vld [vmem:[%s152 + $0x70] sm:$0xff]
        %v194 = vld [vmem:[%s152 + $0x78] sm:$0xff]
        %v195 = vld [vmem:[#allocation5] sm:$0xff]
        %v196 = vld [vmem:[#allocation5 + $0x10] sm:$0xff]
        %v197 = vld [vmem:[#allocation5 + $0x20] sm:$0xff]
        %v198 = vld [vmem:[#allocation5 + $0x30] sm:$0xff]
        %v199 = vld [vmem:[#allocation5 + $0x40] sm:$0xff]
        %v200 = vld [vmem:[#allocation5 + $0x50] sm:$0xff]
        %v201 = vld [vmem:[#allocation5 + $0x60] sm:$0xff]
        %v202 = vld [vmem:[#allocation5 + $0x70] sm:$0xff]
        %v203 = vld [vmem:[#allocation5 + $0x80] sm:$0xff]
        %v204 = vld [vmem:[#allocation5 + $0x90] sm:$0xff]
        %v205 = vld [vmem:[#allocation5 + $0xa0] sm:$0xff]
        %v206 = vld [vmem:[#allocation5 + $0xb0] sm:$0xff]
        %v207 = vld [vmem:[#allocation5 + $0xc0] sm:$0xff]
        %v208 = vld [vmem:[#allocation5 + $0xd0] sm:$0xff]
        %v209 = vld [vmem:[#allocation5 + $0xe0] sm:$0xff]
        %v210 = vld [vmem:[#allocation5 + $0xf0] sm:$0xff]
        %v211 = vld [vmem:[#allocation5 + $0x1d0] ss:$0 sm:$0xff]
        %212 = vmatprep.subr.mxu0 0.0
        %213 = vmatpush1.msra.mxu0 %v195
        %214 = vmatprep.subr.mxu0 0.0
        %215 = vmatpush1.msra.mxu0 %v196
        %216 = vmatprep.subr.mxu0 0.0
        %217 = vmatpush1.msra.mxu0 %v197
        %218 = vmatprep.subr.mxu0 0.0
        %219 = vmatpush1.msra.mxu0 %v198
        %220 = vmatprep.subr.mxu0 0.0
        %221 = vmatpush1.msra.mxu0 %v199
        %222 = vmatprep.subr.mxu0 0.0
        %223 = vmatpush1.msra.mxu0 %v200
        %224 = vmatprep.subr.mxu0 0.0
        %225 = vmatpush1.msra.mxu0 %v201
        %226 = vmatprep.subr.mxu0 0.0
        %227 = vmatpush1.msra.mxu0 %v202
        %228 = vmatprep.subr.mxu0 0.0
        %229 = vmatpush1.msra.mxu0 %v203
        %230 = vmatprep.subr.mxu0 0.0
        %231 = vmatpush1.msra.mxu0 %v204
        %232 = vmatprep.subr.mxu0 0.0
        %233 = vmatpush1.msra.mxu0 %v205
        %234 = vmatprep.subr.mxu0 0.0
        %235 = vmatpush1.msra.mxu0 %v206
        %236 = vmatprep.subr.mxu0 0.0
        %237 = vmatpush1.msra.mxu0 %v207
        %238 = vmatprep.subr.mxu0 0.0
        %239 = vmatpush1.msra.mxu0 %v208
        %240 = vmatprep.subr.mxu0 0.0
        %241 = vmatpush1.msra.mxu0 %v209
        %242 = vmatprep.subr.mxu0 0.0
        %243 = vmatpush1.msra.mxu0 %v210
        %244 = vmatprep.subr.mxu0 0.0
        %245 = vmatpush1.msra.mxu0 0.0
        %246 = vmatprep.subr.mxu0 0.0
        %247 = vmatpush1.msra.mxu0 0.0
        %248 = vmatprep.subr.mxu0 0.0
        %249 = vmatpush1.msra.mxu0 0.0
        %250 = vmatprep.subr.mxu0 0.0
        %251 = vmatpush1.msra.mxu0 0.0
        %252 = vmatprep.subr.mxu0 0.0
        %253 = vmatpush1.msra.mxu0 0.0
        %254 = vmatprep.subr.mxu0 0.0
        %255 = vmatpush1.msra.mxu0 0.0
        %256 = vmatprep.subr.mxu0 0.0
        %257 = vmatpush1.msra.mxu0 0.0
        %258 = vmatprep.subr.mxu0 0.0
        %259 = vmatpush1.msra.mxu0 0.0
        %260 = vmatprep.subr.mxu0 0.0
        %261 = vmatpush1.msra.mxu0 0.0
        %262 = vmatprep.subr.mxu0 0.0
        %263 = vmatpush1.msra.mxu0 0.0
        %264 = vmatprep.subr.mxu0 0.0
        %265 = vmatpush1.msra.mxu0 0.0
        %266 = vmatprep.subr.mxu0 0.0
        %267 = vmatpush1.msra.mxu0 0.0
        %268 = vmatprep.subr.mxu0 0.0
        %269 = vmatpush1.msra.mxu0 0.0
        %270 = vmatprep.subr.mxu0 0.0
        %271 = vmatpush1.msra.mxu0 0.0
        %272 = vmatprep.subr.mxu0 0.0
        %273 = vmatpush1.msra.mxu0 0.0
        %274 = vmatprep.subr.mxu0 0.0
        %275 = vmatpush1.msra.mxu0 0.0
        %276 = vmatprep.mubr.f32.mxu0 0.0
        %277 = vmatmul.mubr.f32.gmra.mrb[0].mxu0 %v179
        %v278 = vpop.f32.mrb[0].mxu0
        %v279 = vadd.f32 %v211, %v278
        %v280 = vpop.f32.mrb[0].mxu0
        %281 = vmatprep.mubr.f32.mxu0 0.0
        %282 = vmatmul.mubr.f32.gmra.mrb[0].mxu0 %v180
        %v283 = vpop.f32.mrb[0].mxu0
        %v284 = vadd.f32 %v211, %v283
        %v285 = vpop.f32.mrb[0].mxu0
        %286 = vmatprep.mubr.f32.mxu0 0.0
        %287 = vmatmul.mubr.f32.gmra.mrb[0].mxu0 %v181
        %v288 = vpop.f32.mrb[0].mxu0
        %v289 = vadd.f32 %v211, %v288
        %v290 = vpop.f32.mrb[0].mxu0
        %291 = vmatprep.mubr.f32.mxu0 0.0
        %292 = vmatmul.mubr.f32.gmra.mrb[0].mxu0 %v182
        %v293 = vpop.f32.mrb[0].mxu0
        %v294 = vadd.f32 %v211, %v293
        %v295 = vpop.f32.mrb[0].mxu0
        %296 = vmatprep.mubr.f32.mxu0 0.0
        %297 = vmatmul.mubr.f32.gmra.mrb[0].mxu0 %v183
        %v298 = vpop.f32.mrb[0].mxu0
        %v299 = vadd.f32 %v211, %v298
        %v300 = vpop.f32.mrb[0].mxu0
        %301 = vmatprep.mubr.f32.mxu0 0.0
        %302 = vmatmul.mubr.f32.gmra.mrb[0].mxu0 %v184
        %v303 = vpop.f32.mrb[0].mxu0
        %v304 = vadd.f32 %v211, %v303
        %v305 = vpop.f32.mrb[0].mxu0
        %306 = vmatprep.mubr.f32.mxu0 0.0
        %307 = vmatmul.mubr.f32.gmra.mrb[0].mxu0 %v185
        %v308 = vpop.f32.mrb[0].mxu0
        %v309 = vadd.f32 %v211, %v308
        %v310 = vpop.f32.mrb[0].mxu0
        %311 = vmatprep.mubr.f32.mxu0 0.0
        %312 = vmatmul.mubr.f32.gmra.mrb[0].mxu0 %v186
        %v313 = vpop.f32.mrb[0].mxu0
        %v314 = vadd.f32 %v211, %v313
        %v315 = vpop.f32.mrb[0].mxu0
        %316 = vmatprep.mubr.f32.mxu0 0.0
        %317 = vmatmul.mubr.f32.gmra.mrb[0].mxu0 %v187
        %v318 = vpop.f32.mrb[0].mxu0
        %v319 = vadd.f32 %v211, %v318
        %v320 = vpop.f32.mrb[0].mxu0
        %321 = vmatprep.mubr.f32.mxu0 0.0
        %322 = vmatmul.mubr.f32.gmra.mrb[0].mxu0 %v188
        %v323 = vpop.f32.mrb[0].mxu0
        %v324 = vadd.f32 %v211, %v323
        %v325 = vpop.f32.mrb[0].mxu0
        %326 = vmatprep.mubr.f32.mxu0 0.0
        %327 = vmatmul.mubr.f32.gmra.mrb[0].mxu0 %v189
        %v328 = vpop.f32.mrb[0].mxu0
        %v329 = vadd.f32 %v211, %v328
        %v330 = vpop.f32.mrb[0].mxu0
        %331 = vmatprep.mubr.f32.mxu0 0.0
        %332 = vmatmul.mubr.f32.gmra.mrb[0].mxu0 %v190
        %v333 = vpop.f32.mrb[0].mxu0
        %v334 = vadd.f32 %v211, %v333
        %v335 = vpop.f32.mrb[0].mxu0
        %336 = vmatprep.mubr.f32.mxu0 0.0
        %337 = vmatmul.mubr.f32.gmra.mrb[0].mxu0 %v191
        %v338 = vpop.f32.mrb[0].mxu0
        %v339 = vadd.f32 %v211, %v338
        %v340 = vpop.f32.mrb[0].mxu0
        %341 = vmatprep.mubr.f32.mxu0 0.0
        %342 = vmatmul.mubr.f32.gmra.mrb[0].mxu0 %v192
        %v343 = vpop.f32.mrb[0].mxu0
        %v344 = vadd.f32 %v211, %v343
        %v345 = vpop.f32.mrb[0].mxu0
        %346 = vmatprep.mubr.f32.mxu0 0.0
        %347 = vmatmul.mubr.f32.gmra.mrb[0].mxu0 %v193
        %v348 = vpop.f32.mrb[0].mxu0
        %v349 = vadd.f32 %v211, %v348
        %v350 = vpop.f32.mrb[0].mxu0
        %351 = vmatprep.mubr.f32.mxu0 0.0
        %352 = vmatmul.mubr.f32.gmra.mrb[0].mxu0 %v194
        %v353 = vpop.f32.mrb[0].mxu0
        %v354 = vadd.f32 %v211, %v353
        %v355 = vpop.f32.mrb[0].mxu0
        %356 = vdwg.mxu0
        %v357 = vmax.f32 %v279, 0.0
        %v358 = vmax.f32 %v284, 0.0
        %v359 = vmax.f32 %v289, 0.0
        %v360 = vmax.f32 %v294, 0.0
        %v361 = vmax.f32 %v299, 0.0
        %v362 = vmax.f32 %v304, 0.0
        %v363 = vmax.f32 %v309, 0.0
        %v364 = vmax.f32 %v314, 0.0
        %v365 = vmax.f32 %v319, 0.0
        %v366 = vmax.f32 %v324, 0.0
        %v367 = vmax.f32 %v329, 0.0
        %v368 = vmax.f32 %v334, 0.0
        %v369 = vmax.f32 %v339, 0.0
        %v370 = vmax.f32 %v344, 0.0
        %v371 = vmax.f32 %v349, 0.0
        %v372 = vmax.f32 %v354, 0.0
        %v373 = vld [vmem:[#allocation5 + $0x100] sm:$0xff]
        %v374 = vld [vmem:[#allocation5 + $0x110] sm:$0xff]
        %v375 = vld [vmem:[#allocation5 + $0x1d1] ss:$0 sm:$0xff]
        %vm376 = vcmask 130048
        %v378 = vsel %vm376, %v357, 0
        %v381 = vsel %vm376, %v358, 0
        %v384 = vsel %vm376, %v359, 0
        %v387 = vsel %vm376, %v360, 0
        %v390 = vsel %vm376, %v361, 0
        %v393 = vsel %vm376, %v362, 0
        %v396 = vsel %vm376, %v363, 0
        %v399 = vsel %vm376, %v364, 0
        %v402 = vsel %vm376, %v365, 0
        %v405 = vsel %vm376, %v366, 0
        %v408 = vsel %vm376, %v367, 0
        %v411 = vsel %vm376, %v368, 0
        %v414 = vsel %vm376, %v369, 0
        %v417 = vsel %vm376, %v370, 0
        %v420 = vsel %vm376, %v371, 0
        %v423 = vsel %vm376, %v372, 0
        %425 = vmatprep.subr.mxu0 0.0
        %426 = vmatpush1.msra.mxu0 %v373
        %427 = vmatprep.subr.mxu0 0.0
        %428 = vmatpush1.msra.mxu0 %v374
        %429 = vmatprep.subr.mxu0 0.0
        %430 = vmatpush1.msra.mxu0 0.0
        %431 = vmatprep.subr.mxu0 0.0
        %432 = vmatpush1.msra.mxu0 0.0
        %433 = vmatprep.subr.mxu0 0.0
        %434 = vmatpush1.msra.mxu0 0.0
        %435 = vmatprep.subr.mxu0 0.0
        %436 = vmatpush1.msra.mxu0 0.0
        %437 = vmatprep.subr.mxu0 0.0
        %438 = vmatpush1.msra.mxu0 0.0
        %439 = vmatprep.subr.mxu0 0.0
        %440 = vmatpush1.msra.mxu0 0.0
        %441 = vmatprep.subr.mxu0 0.0
        %442 = vmatpush1.msra.mxu0 0.0
        %443 = vmatprep.subr.mxu0 0.0
        %444 = vmatpush1.msra.mxu0 0.0
        %445 = vmatprep.subr.mxu0 0.0
        %446 = vmatpush1.msra.mxu0 0.0
        %447 = vmatprep.subr.mxu0 0.0
        %448 = vmatpush1.msra.mxu0 0.0
        %449 = vmatprep.subr.mxu0 0.0
        %450 = vmatpush1.msra.mxu0 0.0
        %451 = vmatprep.subr.mxu0 0.0
        %452 = vmatpush1.msra.mxu0 0.0
        %453 = vmatprep.subr.mxu0 0.0
        %454 = vmatpush1.msra.mxu0 0.0
        %455 = vmatprep.subr.mxu0 0.0
        %456 = vmatpush1.msra.mxu0 0.0
        %457 = vmatprep.subr.mxu0 0.0
        %458 = vmatpush1.msra.mxu0 0.0
        %459 = vmatprep.subr.mxu0 0.0
        %460 = vmatpush1.msra.mxu0 0.0
        %461 = vmatprep.subr.mxu0 0.0
        %462 = vmatpush1.msra.mxu0 0.0
        %463 = vmatprep.subr.mxu0 0.0
        %464 = vmatpush1.msra.mxu0 0.0
        %465 = vmatprep.subr.mxu0 0.0
        %466 = vmatpush1.msra.mxu0 0.0
        %467 = vmatprep.subr.mxu0 0.0
        %468 = vmatpush1.msra.mxu0 0.0
        %469 = vmatprep.subr.mxu0 0.0
        %470 = vmatpush1.msra.mxu0 0.0
        %471 = vmatprep.subr.mxu0 0.0
        %472 = vmatpush1.msra.mxu0 0.0
        %473 = vmatprep.subr.mxu0 0.0
        %474 = vmatpush1.msra.mxu0 0.0
        %475 = vmatprep.subr.mxu0 0.0
        %476 = vmatpush1.msra.mxu0 0.0
        %477 = vmatprep.subr.mxu0 0.0
        %478 = vmatpush1.msra.mxu0 0.0
        %479 = vmatprep.subr.mxu0 0.0
        %480 = vmatpush1.msra.mxu0 0.0
        %481 = vmatprep.subr.mxu0 0.0
        %482 = vmatpush1.msra.mxu0 0.0
        %483 = vmatprep.subr.mxu0 0.0
        %484 = vmatpush1.msra.mxu0 0.0
        %485 = vmatprep.subr.mxu0 0.0
        %486 = vmatpush1.msra.mxu0 0.0
        %487 = vmatprep.subr.mxu0 0.0
        %488 = vmatpush1.msra.mxu0 0.0
        %489 = vmatprep.mubr.f32.mxu0 0.0
        %490 = vmatmul.mubr.f32.gmra.mrb[0].mxu0 %v378
        %v491 = vpop.f32.mrb[0].mxu0
        %v492 = vadd.f32 %v375, %v491
        %v493 = vpop.f32.mrb[0].mxu0
        %494 = vmatprep.mubr.f32.mxu0 0.0
        %495 = vmatmul.mubr.f32.gmra.mrb[0].mxu0 %v381
        %v496 = vpop.f32.mrb[0].mxu0
        %v497 = vadd.f32 %v375, %v496
        %v498 = vpop.f32.mrb[0].mxu0
        %499 = vmatprep.mubr.f32.mxu0 0.0
        %500 = vmatmul.mubr.f32.gmra.mrb[0].mxu0 %v384
        %v501 = vpop.f32.mrb[0].mxu0
        %v502 = vadd.f32 %v375, %v501
        %v503 = vpop.f32.mrb[0].mxu0
        %504 = vmatprep.mubr.f32.mxu0 0.0
        %505 = vmatmul.mubr.f32.gmra.mrb[0].mxu0 %v387
        %v506 = vpop.f32.mrb[0].mxu0
        %v507 = vadd.f32 %v375, %v506
        %v508 = vpop.f32.mrb[0].mxu0
        %509 = vmatprep.mubr.f32.mxu0 0.0
        %510 = vmatmul.mubr.f32.gmra.mrb[0].mxu0 %v390
        %v511 = vpop.f32.mrb[0].mxu0
        %v512 = vadd.f32 %v375, %v511
        %v513 = vpop.f32.mrb[0].mxu0
        %514 = vmatprep.mubr.f32.mxu0 0.0
        %515 = vmatmul.mubr.f32.gmra.mrb[0].mxu0 %v393
        %v516 = vpop.f32.mrb[0].mxu0
        %v517 = vadd.f32 %v375, %v516
        %v518 = vpop.f32.mrb[0].mxu0
        %519 = vmatprep.mubr.f32.mxu0 0.0
        %520 = vmatmul.mubr.f32.gmra.mrb[0].mxu0 %v396
        %v521 = vpop.f32.mrb[0].mxu0
        %v522 = vadd.f32 %v375, %v521
        %v523 = vpop.f32.mrb[0].mxu0
        %524 = vmatprep.mubr.f32.mxu0 0.0
        %525 = vmatmul.mubr.f32.gmra.mrb[0].mxu0 %v399
        %v526 = vpop.f32.mrb[0].mxu0
        %v527 = vadd.f32 %v375, %v526
        %v528 = vpop.f32.mrb[0].mxu0
        %529 = vmatprep.mubr.f32.mxu0 0.0
        %530 = vmatmul.mubr.f32.gmra.mrb[0].mxu0 %v402
        %v531 = vpop.f32.mrb[0].mxu0
        %v532 = vadd.f32 %v375, %v531
        %v533 = vpop.f32.mrb[0].mxu0
        %534 = vmatprep.mubr.f32.mxu0 0.0
        %535 = vmatmul.mubr.f32.gmra.mrb[0].mxu0 %v405
        %v536 = vpop.f32.mrb[0].mxu0
        %v537 = vadd.f32 %v375, %v536
        %v538 = vpop.f32.mrb[0].mxu0
        %539 = vmatprep.mubr.f32.mxu0 0.0
        %540 = vmatmul.mubr.f32.gmra.mrb[0].mxu0 %v408
        %v541 = vpop.f32.mrb[0].mxu0
        %v542 = vadd.f32 %v375, %v541
        %v543 = vpop.f32.mrb[0].mxu0
        %544 = vmatprep.mubr.f32.mxu0 0.0
        %545 = vmatmul.mubr.f32.gmra.mrb[0].mxu0 %v411
        %v546 = vpop.f32.mrb[0].mxu0
        %v547 = vadd.f32 %v375, %v546
        %v548 = vpop.f32.mrb[0].mxu0
        %549 = vmatprep.mubr.f32.mxu0 0.0
        %550 = vmatmul.mubr.f32.gmra.mrb[0].mxu0 %v414
        %v551 = vpop.f32.mrb[0].mxu0
        %v552 = vadd.f32 %v375, %v551
        %v553 = vpop.f32.mrb[0].mxu0
        %554 = vmatprep.mubr.f32.mxu0 0.0
        %555 = vmatmul.mubr.f32.gmra.mrb[0].mxu0 %v417
        %v556 = vpop.f32.mrb[0].mxu0
        %v557 = vadd.f32 %v375, %v556
        %v558 = vpop.f32.mrb[0].mxu0
        %559 = vmatprep.mubr.f32.mxu0 0.0
        %560 = vmatmul.mubr.f32.gmra.mrb[0].mxu0 %v420
        %v561 = vpop.f32.mrb[0].mxu0
        %v562 = vadd.f32 %v375, %v561
        %v563 = vpop.f32.mrb[0].mxu0
        %564 = vmatprep.mubr.f32.mxu0 0.0
        %565 = vmatmul.mubr.f32.gmra.mrb[0].mxu0 %v423
        %v566 = vpop.f32.mrb[0].mxu0
        %v567 = vadd.f32 %v375, %v566
        %v568 = vpop.f32.mrb[0].mxu0
        %569 = vdwg.mxu0
        %v570 = vmax.f32 %v492, 0.0
        %v571 = vmax.f32 %v497, 0.0
        %v572 = vmax.f32 %v502, 0.0
        %v573 = vmax.f32 %v507, 0.0
        %v574 = vmax.f32 %v512, 0.0
        %v575 = vmax.f32 %v517, 0.0
        %v576 = vmax.f32 %v522, 0.0
        %v577 = vmax.f32 %v527, 0.0
        %v578 = vmax.f32 %v532, 0.0
        %v579 = vmax.f32 %v537, 0.0
        %v580 = vmax.f32 %v542, 0.0
        %v581 = vmax.f32 %v547, 0.0
        %v582 = vmax.f32 %v552, 0.0
        %v583 = vmax.f32 %v557, 0.0
        %v584 = vmax.f32 %v562, 0.0
        %v585 = vmax.f32 %v567, 0.0
        %v586 = vld [vmem:[#allocation5 + $0x120] sm:$0xff]
        %v587 = vld [vmem:[#allocation5 + $0x130] sm:$0xff]
        %v588 = vld [vmem:[#allocation5 + $0x1d2] ss:$0 sm:$0xff]
        %v590 = vsel %vm376, %v570, 0
        %v593 = vsel %vm376, %v571, 0
        %v596 = vsel %vm376, %v572, 0
        %v599 = vsel %vm376, %v573, 0
        %v602 = vsel %vm376, %v574, 0
        %v605 = vsel %vm376, %v575, 0
        %v608 = vsel %vm376, %v576, 0
        %v611 = vsel %vm376, %v577, 0
        %v614 = vsel %vm376, %v578, 0
        %v617 = vsel %vm376, %v579, 0
        %v620 = vsel %vm376, %v580, 0
        %v623 = vsel %vm376, %v581, 0
        %v626 = vsel %vm376, %v582, 0
        %v629 = vsel %vm376, %v583, 0
        %v632 = vsel %vm376, %v584, 0
        %v635 = vsel %vm376, %v585, 0
        %637 = vmatprep.subr.mxu0 0.0
        %638 = vmatpush1.msra.mxu0 %v586
        %639 = vmatprep.subr.mxu0 0.0
        %640 = vmatpush1.msra.mxu0 %v587
        %641 = vmatprep.subr.mxu0 0.0
        %642 = vmatpush1.msra.mxu0 0.0
        %643 = vmatprep.subr.mxu0 0.0
        %644 = vmatpush1.msra.mxu0 0.0
        %645 = vmatprep.subr.mxu0 0.0
        %646 = vmatpush1.msra.mxu0 0.0
        %647 = vmatprep.subr.mxu0 0.0
        %648 = vmatpush1.msra.mxu0 0.0
        %649 = vmatprep.subr.mxu0 0.0
        %650 = vmatpush1.msra.mxu0 0.0
        %651 = vmatprep.subr.mxu0 0.0
        %652 = vmatpush1.msra.mxu0 0.0
        %653 = vmatprep.subr.mxu0 0.0
        %654 = vmatpush1.msra.mxu0 0.0
        %655 = vmatprep.subr.mxu0 0.0
        %656 = vmatpush1.msra.mxu0 0.0
        %657 = vmatprep.subr.mxu0 0.0
        %658 = vmatpush1.msra.mxu0 0.0
        %659 = vmatprep.subr.mxu0 0.0
        %660 = vmatpush1.msra.mxu0 0.0
        %661 = vmatprep.subr.mxu0 0.0
        %662 = vmatpush1.msra.mxu0 0.0
        %663 = vmatprep.subr.mxu0 0.0
        %664 = vmatpush1.msra.mxu0 0.0
        %665 = vmatprep.subr.mxu0 0.0
        %666 = vmatpush1.msra.mxu0 0.0
        %667 = vmatprep.subr.mxu0 0.0
        %668 = vmatpush1.msra.mxu0 0.0
        %669 = vmatprep.subr.mxu0 0.0
        %670 = vmatpush1.msra.mxu0 0.0
        %671 = vmatprep.subr.mxu0 0.0
        %672 = vmatpush1.msra.mxu0 0.0
        %673 = vmatprep.subr.mxu0 0.0
        %674 = vmatpush1.msra.mxu0 0.0
        %675 = vmatprep.subr.mxu0 0.0
        %676 = vmatpush1.msra.mxu0 0.0
        %677 = vmatprep.subr.mxu0 0.0
        %678 = vmatpush1.msra.mxu0 0.0
        %679 = vmatprep.subr.mxu0 0.0
        %680 = vmatpush1.msra.mxu0 0.0
        %681 = vmatprep.subr.mxu0 0.0
        %682 = vmatpush1.msra.mxu0 0.0
        %683 = vmatprep.subr.mxu0 0.0
        %684 = vmatpush1.msra.mxu0 0.0
        %685 = vmatprep.subr.mxu0 0.0
        %686 = vmatpush1.msra.mxu0 0.0
        %687 = vmatprep.subr.mxu0 0.0
        %688 = vmatpush1.msra.mxu0 0.0
        %689 = vmatprep.subr.mxu0 0.0
        %690 = vmatpush1.msra.mxu0 0.0
        %691 = vmatprep.subr.mxu0 0.0
        %692 = vmatpush1.msra.mxu0 0.0
        %693 = vmatprep.subr.mxu0 0.0
        %694 = vmatpush1.msra.mxu0 0.0
        %695 = vmatprep.subr.mxu0 0.0
        %696 = vmatpush1.msra.mxu0 0.0
        %697 = vmatprep.subr.mxu0 0.0
        %698 = vmatpush1.msra.mxu0 0.0
        %699 = vmatprep.subr.mxu0 0.0
        %700 = vmatpush1.msra.mxu0 0.0
        %701 = vmatprep.mubr.f32.mxu0 0.0
        %702 = vmatmul.mubr.f32.gmra.mrb[0].mxu0 %v590
        %v703 = vpop.f32.mrb[0].mxu0
        %v704 = vadd.f32 %v588, %v703
        %v705 = vpop.f32.mrb[0].mxu0
        %706 = vmatprep.mubr.f32.mxu0 0.0
        %707 = vmatmul.mubr.f32.gmra.mrb[0].mxu0 %v593
        %v708 = vpop.f32.mrb[0].mxu0
        %v709 = vadd.f32 %v588, %v708
        %v710 = vpop.f32.mrb[0].mxu0
        %711 = vmatprep.mubr.f32.mxu0 0.0
        %712 = vmatmul.mubr.f32.gmra.mrb[0].mxu0 %v596
        %v713 = vpop.f32.mrb[0].mxu0
        %v714 = vadd.f32 %v588, %v713
        %v715 = vpop.f32.mrb[0].mxu0
        %716 = vmatprep.mubr.f32.mxu0 0.0
        %717 = vmatmul.mubr.f32.gmra.mrb[0].mxu0 %v599
        %v718 = vpop.f32.mrb[0].mxu0
        %v719 = vadd.f32 %v588, %v718
        %v720 = vpop.f32.mrb[0].mxu0
        %721 = vmatprep.mubr.f32.mxu0 0.0
        %722 = vmatmul.mubr.f32.gmra.mrb[0].mxu0 %v602
        %v723 = vpop.f32.mrb[0].mxu0
        %v724 = vadd.f32 %v588, %v723
        %v725 = vpop.f32.mrb[0].mxu0
        %726 = vmatprep.mubr.f32.mxu0 0.0
        %727 = vmatmul.mubr.f32.gmra.mrb[0].mxu0 %v605
        %v728 = vpop.f32.mrb[0].mxu0
        %v729 = vadd.f32 %v588, %v728
        %v730 = vpop.f32.mrb[0].mxu0
        %731 = vmatprep.mubr.f32.mxu0 0.0
        %732 = vmatmul.mubr.f32.gmra.mrb[0].mxu0 %v608
        %v733 = vpop.f32.mrb[0].mxu0
        %v734 = vadd.f32 %v588, %v733
        %v735 = vpop.f32.mrb[0].mxu0
        %736 = vmatprep.mubr.f32.mxu0 0.0
        %737 = vmatmul.mubr.f32.gmra.mrb[0].mxu0 %v611
        %v738 = vpop.f32.mrb[0].mxu0
        %v739 = vadd.f32 %v588, %v738
        %v740 = vpop.f32.mrb[0].mxu0
        %741 = vmatprep.mubr.f32.mxu0 0.0
        %742 = vmatmul.mubr.f32.gmra.mrb[0].mxu0 %v614
        %v743 = vpop.f32.mrb[0].mxu0
        %v744 = vadd.f32 %v588, %v743
        %v745 = vpop.f32.mrb[0].mxu0
        %746 = vmatprep.mubr.f32.mxu0 0.0
        %747 = vmatmul.mubr.f32.gmra.mrb[0].mxu0 %v617
        %v748 = vpop.f32.mrb[0].mxu0
        %v749 = vadd.f32 %v588, %v748
        %v750 = vpop.f32.mrb[0].mxu0
        %751 = vmatprep.mubr.f32.mxu0 0.0
        %752 = vmatmul.mubr.f32.gmra.mrb[0].mxu0 %v620
        %v753 = vpop.f32.mrb[0].mxu0
        %v754 = vadd.f32 %v588, %v753
        %v755 = vpop.f32.mrb[0].mxu0
        %756 = vmatprep.mubr.f32.mxu0 0.0
        %757 = vmatmul.mubr.f32.gmra.mrb[0].mxu0 %v623
        %v758 = vpop.f32.mrb[0].mxu0
        %v759 = vadd.f32 %v588, %v758
        %v760 = vpop.f32.mrb[0].mxu0
        %761 = vmatprep.mubr.f32.mxu0 0.0
        %762 = vmatmul.mubr.f32.gmra.mrb[0].mxu0 %v626
        %v763 = vpop.f32.mrb[0].mxu0
        %v764 = vadd.f32 %v588, %v763
        %v765 = vpop.f32.mrb[0].mxu0
        %766 = vmatprep.mubr.f32.mxu0 0.0
        %767 = vmatmul.mubr.f32.gmra.mrb[0].mxu0 %v629
        %v768 = vpop.f32.mrb[0].mxu0
        %v769 = vadd.f32 %v588, %v768
        %v770 = vpop.f32.mrb[0].mxu0
        %771 = vmatprep.mubr.f32.mxu0 0.0
        %772 = vmatmul.mubr.f32.gmra.mrb[0].mxu0 %v632
        %v773 = vpop.f32.mrb[0].mxu0
        %v774 = vadd.f32 %v588, %v773
        %v775 = vpop.f32.mrb[0].mxu0
        %776 = vmatprep.mubr.f32.mxu0 0.0
        %777 = vmatmul.mubr.f32.gmra.mrb[0].mxu0 %v635
        %v778 = vpop.f32.mrb[0].mxu0
        %v779 = vadd.f32 %v588, %v778
        %v780 = vpop.f32.mrb[0].mxu0
        %781 = vdwg.mxu0
        %v782 = vmax.f32 %v704, 0.0
        %v783 = vmax.f32 %v709, 0.0
        %v784 = vmax.f32 %v714, 0.0
        %v785 = vmax.f32 %v719, 0.0
        %v786 = vmax.f32 %v724, 0.0
        %v787 = vmax.f32 %v729, 0.0
        %v788 = vmax.f32 %v734, 0.0
        %v789 = vmax.f32 %v739, 0.0
        %v790 = vmax.f32 %v744, 0.0
        %v791 = vmax.f32 %v749, 0.0
        %v792 = vmax.f32 %v754, 0.0
        %v793 = vmax.f32 %v759, 0.0
        %v794 = vmax.f32 %v764, 0.0
        %v795 = vmax.f32 %v769, 0.0
        %v796 = vmax.f32 %v774, 0.0
        %v797 = vmax.f32 %v779, 0.0
        %v798 = vld [vmem:[#allocation5 + $0x140] sm:$0xff]
        %v799 = vld [vmem:[#allocation5 + $0x1d3] ss:$0 sm:$0xff]
        %vm800 = vcmask 64512
        %v802 = vsel %vm800, %v782, 0
        %v805 = vsel %vm800, %v783, 0
        %v808 = vsel %vm800, %v784, 0
        %v811 = vsel %vm800, %v785, 0
        %v814 = vsel %vm800, %v786, 0
        %v817 = vsel %vm800, %v787, 0
        %v820 = vsel %vm800, %v788, 0
        %v823 = vsel %vm800, %v789, 0
        %v826 = vsel %vm800, %v790, 0
        %v829 = vsel %vm800, %v791, 0
        %v832 = vsel %vm800, %v792, 0
        %v835 = vsel %vm800, %v793, 0
        %v838 = vsel %vm800, %v794, 0
        %v841 = vsel %vm800, %v795, 0
        %v844 = vsel %vm800, %v796, 0
        %v847 = vsel %vm800, %v797, 0
        %849 = vmatprep.subr.mxu0 0.0
        %850 = vmatpush1.msra.mxu0 %v798
        %851 = vmatprep.subr.mxu0 0.0
        %852 = vmatpush1.msra.mxu0 0.0
        %853 = vmatprep.subr.mxu0 0.0
        %854 = vmatpush1.msra.mxu0 0.0
        %855 = vmatprep.subr.mxu0 0.0
        %856 = vmatpush1.msra.mxu0 0.0
        %857 = vmatprep.subr.mxu0 0.0
        %858 = vmatpush1.msra.mxu0 0.0
        %859 = vmatprep.subr.mxu0 0.0
        %860 = vmatpush1.msra.mxu0 0.0
        %861 = vmatprep.subr.mxu0 0.0
        %862 = vmatpush1.msra.mxu0 0.0
        %863 = vmatprep.subr.mxu0 0.0
        %864 = vmatpush1.msra.mxu0 0.0
        %865 = vmatprep.subr.mxu0 0.0
        %866 = vmatpush1.msra.mxu0 0.0
        %867 = vmatprep.subr.mxu0 0.0
        %868 = vmatpush1.msra.mxu0 0.0
        %869 = vmatprep.subr.mxu0 0.0
        %870 = vmatpush1.msra.mxu0 0.0
        %871 = vmatprep.subr.mxu0 0.0
        %872 = vmatpush1.msra.mxu0 0.0
        %873 = vmatprep.subr.mxu0 0.0
        %874 = vmatpush1.msra.mxu0 0.0
        %875 = vmatprep.subr.mxu0 0.0
        %876 = vmatpush1.msra.mxu0 0.0
        %877 = vmatprep.subr.mxu0 0.0
        %878 = vmatpush1.msra.mxu0 0.0
        %879 = vmatprep.subr.mxu0 0.0
        %880 = vmatpush1.msra.mxu0 0.0
        %881 = vmatprep.subr.mxu0 0.0
        %882 = vmatpush1.msra.mxu0 0.0
        %883 = vmatprep.subr.mxu0 0.0
        %884 = vmatpush1.msra.mxu0 0.0
        %885 = vmatprep.subr.mxu0 0.0
        %886 = vmatpush1.msra.mxu0 0.0
        %887 = vmatprep.subr.mxu0 0.0
        %888 = vmatpush1.msra.mxu0 0.0
        %889 = vmatprep.subr.mxu0 0.0
        %890 = vmatpush1.msra.mxu0 0.0
        %891 = vmatprep.subr.mxu0 0.0
        %892 = vmatpush1.msra.mxu0 0.0
        %893 = vmatprep.subr.mxu0 0.0
        %894 = vmatpush1.msra.mxu0 0.0
        %895 = vmatprep.subr.mxu0 0.0
        %896 = vmatpush1.msra.mxu0 0.0
        %897 = vmatprep.subr.mxu0 0.0
        %898 = vmatpush1.msra.mxu0 0.0
        %899 = vmatprep.subr.mxu0 0.0
        %900 = vmatpush1.msra.mxu0 0.0
        %901 = vmatprep.subr.mxu0 0.0
        %902 = vmatpush1.msra.mxu0 0.0
        %903 = vmatprep.subr.mxu0 0.0
        %904 = vmatpush1.msra.mxu0 0.0
        %905 = vmatprep.subr.mxu0 0.0
        %906 = vmatpush1.msra.mxu0 0.0
        %907 = vmatprep.subr.mxu0 0.0
        %908 = vmatpush1.msra.mxu0 0.0
        %909 = vmatprep.subr.mxu0 0.0
        %910 = vmatpush1.msra.mxu0 0.0
        %911 = vmatprep.subr.mxu0 0.0
        %912 = vmatpush1.msra.mxu0 0.0
        %913 = vmatprep.mubr.f32.mxu0 0.0
        %914 = vmatmul.mubr.f32.gmra.mrb[0].mxu0 %v802
        %v915 = vpop.f32.mrb[0].mxu0
        %v916 = vadd.f32 %v799, %v915
        %v917 = vpop.f32.mrb[0].mxu0
        %918 = vmatprep.mubr.f32.mxu0 0.0
        %919 = vmatmul.mubr.f32.gmra.mrb[0].mxu0 %v805
        %v920 = vpop.f32.mrb[0].mxu0
        %v921 = vadd.f32 %v799, %v920
        %v922 = vpop.f32.mrb[0].mxu0
        %923 = vmatprep.mubr.f32.mxu0 0.0
        %924 = vmatmul.mubr.f32.gmra.mrb[0].mxu0 %v808
        %v925 = vpop.f32.mrb[0].mxu0
        %v926 = vadd.f32 %v799, %v925
        %v927 = vpop.f32.mrb[0].mxu0
        %928 = vmatprep.mubr.f32.mxu0 0.0
        %929 = vmatmul.mubr.f32.gmra.mrb[0].mxu0 %v811
        %v930 = vpop.f32.mrb[0].mxu0
        %v931 = vadd.f32 %v799, %v930
        %v932 = vpop.f32.mrb[0].mxu0
        %933 = vmatprep.mubr.f32.mxu0 0.0
        %934 = vmatmul.mubr.f32.gmra.mrb[0].mxu0 %v814
        %v935 = vpop.f32.mrb[0].mxu0
        %v936 = vadd.f32 %v799, %v935
        %v937 = vpop.f32.mrb[0].mxu0
        %938 = vmatprep.mubr.f32.mxu0 0.0
        %939 = vmatmul.mubr.f32.gmra.mrb[0].mxu0 %v817
        %v940 = vpop.f32.mrb[0].mxu0
        %v941 = vadd.f32 %v799, %v940
        %v942 = vpop.f32.mrb[0].mxu0
        %943 = vmatprep.mubr.f32.mxu0 0.0
        %944 = vmatmul.mubr.f32.gmra.mrb[0].mxu0 %v820
        %v945 = vpop.f32.mrb[0].mxu0
        %v946 = vadd.f32 %v799, %v945
        %v947 = vpop.f32.mrb[0].mxu0
        %948 = vmatprep.mubr.f32.mxu0 0.0
        %949 = vmatmul.mubr.f32.gmra.mrb[0].mxu0 %v823
        %v950 = vpop.f32.mrb[0].mxu0
        %v951 = vadd.f32 %v799, %v950
        %v952 = vpop.f32.mrb[0].mxu0
        %953 = vmatprep.mubr.f32.mxu0 0.0
        %954 = vmatmul.mubr.f32.gmra.mrb[0].mxu0 %v826
        %v955 = vpop.f32.mrb[0].mxu0
        %v956 = vadd.f32 %v799, %v955
        %v957 = vpop.f32.mrb[0].mxu0
        %958 = vmatprep.mubr.f32.mxu0 0.0
        %959 = vmatmul.mubr.f32.gmra.mrb[0].mxu0 %v829
        %v960 = vpop.f32.mrb[0].mxu0
        %v961 = vadd.f32 %v799, %v960
        %v962 = vpop.f32.mrb[0].mxu0
        %963 = vmatprep.mubr.f32.mxu0 0.0
        %964 = vmatmul.mubr.f32.gmra.mrb[0].mxu0 %v832
        %v965 = vpop.f32.mrb[0].mxu0
        %v966 = vadd.f32 %v799, %v965
        %v967 = vpop.f32.mrb[0].mxu0
        %968 = vmatprep.mubr.f32.mxu0 0.0
        %969 = vmatmul.mubr.f32.gmra.mrb[0].mxu0 %v835
        %v970 = vpop.f32.mrb[0].mxu0
        %v971 = vadd.f32 %v799, %v970
        %v972 = vpop.f32.mrb[0].mxu0
        %973 = vmatprep.mubr.f32.mxu0 0.0
        %974 = vmatmul.mubr.f32.gmra.mrb[0].mxu0 %v838
        %v975 = vpop.f32.mrb[0].mxu0
        %v976 = vadd.f32 %v799, %v975
        %v977 = vpop.f32.mrb[0].mxu0
        %978 = vmatprep.mubr.f32.mxu0 0.0
        %979 = vmatmul.mubr.f32.gmra.mrb[0].mxu0 %v841
        %v980 = vpop.f32.mrb[0].mxu0
        %v981 = vadd.f32 %v799, %v980
        %v982 = vpop.f32.mrb[0].mxu0
        %983 = vmatprep.mubr.f32.mxu0 0.0
        %984 = vmatmul.mubr.f32.gmra.mrb[0].mxu0 %v844
        %v985 = vpop.f32.mrb[0].mxu0
        %v986 = vadd.f32 %v799, %v985
        %v987 = vpop.f32.mrb[0].mxu0
        %988 = vmatprep.mubr.f32.mxu0 0.0
        %989 = vmatmul.mubr.f32.gmra.mrb[0].mxu0 %v847
        %v990 = vpop.f32.mrb[0].mxu0
        %v991 = vadd.f32 %v799, %v990
        %v992 = vpop.f32.mrb[0].mxu0
        %993 = vdwg.mxu0
        %v994 = vmax.f32 %v916, 0.0
        %v995 = vmax.f32 %v921, 0.0
        %v996 = vmax.f32 %v926, 0.0
        %v997 = vmax.f32 %v931, 0.0
        %v998 = vmax.f32 %v936, 0.0
        %v999 = vmax.f32 %v941, 0.0
        %v1000 = vmax.f32 %v946, 0.0
        %v1001 = vmax.f32 %v951, 0.0
        %v1002 = vmax.f32 %v956, 0.0
        %v1003 = vmax.f32 %v961, 0.0
        %v1004 = vmax.f32 %v966, 0.0
        %v1005 = vmax.f32 %v971, 0.0
        %v1006 = vmax.f32 %v976, 0.0
        %v1007 = vmax.f32 %v981, 0.0
        %v1008 = vmax.f32 %v986, 0.0
        %v1009 = vmax.f32 %v991, 0.0
        %v1010 = vld [vmem:[#allocation5 + $0x150] sm:$0xff]
        %v1011 = vld [vmem:[#allocation5 + $0x160] sm:$0xff]
        %v1012 = vld [vmem:[#allocation5 + $0x170] sm:$0xff]
        %v1013 = vld [vmem:[#allocation5 + $0x180] sm:$0xff]
        %v1014 = vld [vmem:[#allocation5 + $0x1d4] ss:$0 sm:$0xff]
        %vm1015 = vcmask 261120
        %v1017 = vsel %vm1015, %v994, 0
        %v1020 = vsel %vm1015, %v995, 0
        %v1023 = vsel %vm1015, %v996, 0
        %v1026 = vsel %vm1015, %v997, 0
        %v1029 = vsel %vm1015, %v998, 0
        %v1032 = vsel %vm1015, %v999, 0
        %v1035 = vsel %vm1015, %v1000, 0
        %v1038 = vsel %vm1015, %v1001, 0
        %v1041 = vsel %vm1015, %v1002, 0
        %v1044 = vsel %vm1015, %v1003, 0
        %v1047 = vsel %vm1015, %v1004, 0
        %v1050 = vsel %vm1015, %v1005, 0
        %v1053 = vsel %vm1015, %v1006, 0
        %v1056 = vsel %vm1015, %v1007, 0
        %v1059 = vsel %vm1015, %v1008, 0
        %v1062 = vsel %vm1015, %v1009, 0
        %1064 = vmatprep.subr.mxu0 0.0
        %1065 = vmatpush1.msra.mxu0 %v1010
        %1066 = vmatprep.subr.mxu0 0.0
        %1067 = vmatpush1.msra.mxu0 %v1011
        %1068 = vmatprep.subr.mxu0 0.0
        %1069 = vmatpush1.msra.mxu0 %v1012
        %1070 = vmatprep.subr.mxu0 0.0
        %1071 = vmatpush1.msra.mxu0 %v1013
        %1072 = vmatprep.subr.mxu0 0.0
        %1073 = vmatpush1.msra.mxu0 0.0
        %1074 = vmatprep.subr.mxu0 0.0
        %1075 = vmatpush1.msra.mxu0 0.0
        %1076 = vmatprep.subr.mxu0 0.0
        %1077 = vmatpush1.msra.mxu0 0.0
        %1078 = vmatprep.subr.mxu0 0.0
        %1079 = vmatpush1.msra.mxu0 0.0
        %1080 = vmatprep.subr.mxu0 0.0
        %1081 = vmatpush1.msra.mxu0 0.0
        %1082 = vmatprep.subr.mxu0 0.0
        %1083 = vmatpush1.msra.mxu0 0.0
        %1084 = vmatprep.subr.mxu0 0.0
        %1085 = vmatpush1.msra.mxu0 0.0
        %1086 = vmatprep.subr.mxu0 0.0
        %1087 = vmatpush1.msra.mxu0 0.0
        %1088 = vmatprep.subr.mxu0 0.0
        %1089 = vmatpush1.msra.mxu0 0.0
        %1090 = vmatprep.subr.mxu0 0.0
        %1091 = vmatpush1.msra.mxu0 0.0
        %1092 = vmatprep.subr.mxu0 0.0
        %1093 = vmatpush1.msra.mxu0 0.0
        %1094 = vmatprep.subr.mxu0 0.0
        %1095 = vmatpush1.msra.mxu0 0.0
        %1096 = vmatprep.subr.mxu0 0.0
        %1097 = vmatpush1.msra.mxu0 0.0
        %1098 = vmatprep.subr.mxu0 0.0
        %1099 = vmatpush1.msra.mxu0 0.0
        %1100 = vmatprep.subr.mxu0 0.0
        %1101 = vmatpush1.msra.mxu0 0.0
        %1102 = vmatprep.subr.mxu0 0.0
        %1103 = vmatpush1.msra.mxu0 0.0
        %1104 = vmatprep.subr.mxu0 0.0
        %1105 = vmatpush1.msra.mxu0 0.0
        %1106 = vmatprep.subr.mxu0 0.0
        %1107 = vmatpush1.msra.mxu0 0.0
        %1108 = vmatprep.subr.mxu0 0.0
        %1109 = vmatpush1.msra.mxu0 0.0
        %1110 = vmatprep.subr.mxu0 0.0
        %1111 = vmatpush1.msra.mxu0 0.0
        %1112 = vmatprep.subr.mxu0 0.0
        %1113 = vmatpush1.msra.mxu0 0.0
        %1114 = vmatprep.subr.mxu0 0.0
        %1115 = vmatpush1.msra.mxu0 0.0
        %1116 = vmatprep.subr.mxu0 0.0
        %1117 = vmatpush1.msra.mxu0 0.0
        %1118 = vmatprep.subr.mxu0 0.0
        %1119 = vmatpush1.msra.mxu0 0.0
        %1120 = vmatprep.subr.mxu0 0.0
        %1121 = vmatpush1.msra.mxu0 0.0
        %1122 = vmatprep.subr.mxu0 0.0
        %1123 = vmatpush1.msra.mxu0 0.0
        %1124 = vmatprep.subr.mxu0 0.0
        %1125 = vmatpush1.msra.mxu0 0.0
        %1126 = vmatprep.subr.mxu0 0.0
        %1127 = vmatpush1.msra.mxu0 0.0
        %1128 = vmatprep.mubr.f32.mxu0 0.0
        %1129 = vmatmul.mubr.f32.gmra.mrb[0].mxu0 %v1017
        %v1130 = vpop.f32.mrb[0].mxu0
        %v1131 = vadd.f32 %v1014, %v1130
        %v1132 = vpop.f32.mrb[0].mxu0
        %1133 = vmatprep.mubr.f32.mxu0 0.0
        %1134 = vmatmul.mubr.f32.gmra.mrb[0].mxu0 %v1020
        %v1135 = vpop.f32.mrb[0].mxu0
        %v1136 = vadd.f32 %v1014, %v1135
        %v1137 = vpop.f32.mrb[0].mxu0
        %1138 = vmatprep.mubr.f32.mxu0 0.0
        %1139 = vmatmul.mubr.f32.gmra.mrb[0].mxu0 %v1023
        %v1140 = vpop.f32.mrb[0].mxu0
        %v1141 = vadd.f32 %v1014, %v1140
        %v1142 = vpop.f32.mrb[0].mxu0
        %1143 = vmatprep.mubr.f32.mxu0 0.0
        %1144 = vmatmul.mubr.f32.gmra.mrb[0].mxu0 %v1026
        %v1145 = vpop.f32.mrb[0].mxu0
        %v1146 = vadd.f32 %v1014, %v1145
        %v1147 = vpop.f32.mrb[0].mxu0
        %1148 = vmatprep.mubr.f32.mxu0 0.0
        %1149 = vmatmul.mubr.f32.gmra.mrb[0].mxu0 %v1029
        %v1150 = vpop.f32.mrb[0].mxu0
        %v1151 = vadd.f32 %v1014, %v1150
        %v1152 = vpop.f32.mrb[0].mxu0
        %1153 = vmatprep.mubr.f32.mxu0 0.0
        %1154 = vmatmul.mubr.f32.gmra.mrb[0].mxu0 %v1032
        %v1155 = vpop.f32.mrb[0].mxu0
        %v1156 = vadd.f32 %v1014, %v1155
        %v1157 = vpop.f32.mrb[0].mxu0
        %1158 = vmatprep.mubr.f32.mxu0 0.0
        %1159 = vmatmul.mubr.f32.gmra.mrb[0].mxu0 %v1035
        %v1160 = vpop.f32.mrb[0].mxu0
        %v1161 = vadd.f32 %v1014, %v1160
        %v1162 = vpop.f32.mrb[0].mxu0
        %1163 = vmatprep.mubr.f32.mxu0 0.0
        %1164 = vmatmul.mubr.f32.gmra.mrb[0].mxu0 %v1038
        %v1165 = vpop.f32.mrb[0].mxu0
        %v1166 = vadd.f32 %v1014, %v1165
        %v1167 = vpop.f32.mrb[0].mxu0
        %1168 = vmatprep.mubr.f32.mxu0 0.0
        %1169 = vmatmul.mubr.f32.gmra.mrb[0].mxu0 %v1041
        %v1170 = vpop.f32.mrb[0].mxu0
        %v1171 = vadd.f32 %v1014, %v1170
        %v1172 = vpop.f32.mrb[0].mxu0
        %1173 = vmatprep.mubr.f32.mxu0 0.0
        %1174 = vmatmul.mubr.f32.gmra.mrb[0].mxu0 %v1044
        %v1175 = vpop.f32.mrb[0].mxu0
        %v1176 = vadd.f32 %v1014, %v1175
        %v1177 = vpop.f32.mrb[0].mxu0
        %1178 = vmatprep.mubr.f32.mxu0 0.0
        %1179 = vmatmul.mubr.f32.gmra.mrb[0].mxu0 %v1047
        %v1180 = vpop.f32.mrb[0].mxu0
        %v1181 = vadd.f32 %v1014, %v1180
        %v1182 = vpop.f32.mrb[0].mxu0
        %1183 = vmatprep.mubr.f32.mxu0 0.0
        %1184 = vmatmul.mubr.f32.gmra.mrb[0].mxu0 %v1050
        %v1185 = vpop.f32.mrb[0].mxu0
        %v1186 = vadd.f32 %v1014, %v1185
        %v1187 = vpop.f32.mrb[0].mxu0
        %1188 = vmatprep.mubr.f32.mxu0 0.0
        %1189 = vmatmul.mubr.f32.gmra.mrb[0].mxu0 %v1053
        %v1190 = vpop.f32.mrb[0].mxu0
        %v1191 = vadd.f32 %v1014, %v1190
        %v1192 = vpop.f32.mrb[0].mxu0
        %1193 = vmatprep.mubr.f32.mxu0 0.0
        %1194 = vmatmul.mubr.f32.gmra.mrb[0].mxu0 %v1056
        %v1195 = vpop.f32.mrb[0].mxu0
        %v1196 = vadd.f32 %v1014, %v1195
        %v1197 = vpop.f32.mrb[0].mxu0
        %1198 = vmatprep.mubr.f32.mxu0 0.0
        %1199 = vmatmul.mubr.f32.gmra.mrb[0].mxu0 %v1059
        %v1200 = vpop.f32.mrb[0].mxu0
        %v1201 = vadd.f32 %v1014, %v1200
        %v1202 = vpop.f32.mrb[0].mxu0
        %1203 = vmatprep.mubr.f32.mxu0 0.0
        %1204 = vmatmul.mubr.f32.gmra.mrb[0].mxu0 %v1062
        %v1205 = vpop.f32.mrb[0].mxu0
        %v1206 = vadd.f32 %v1014, %v1205
        %v1207 = vpop.f32.mrb[0].mxu0
        %1208 = vdwg.mxu0
        %v1209 = vmax.f32 %v1131, 0.0
        %v1210 = vmax.f32 %v1136, 0.0
        %v1211 = vmax.f32 %v1141, 0.0
        %v1212 = vmax.f32 %v1146, 0.0
        %v1213 = vmax.f32 %v1151, 0.0
        %v1214 = vmax.f32 %v1156, 0.0
        %v1215 = vmax.f32 %v1161, 0.0
        %v1216 = vmax.f32 %v1166, 0.0
        %v1217 = vmax.f32 %v1171, 0.0
        %v1218 = vmax.f32 %v1176, 0.0
        %v1219 = vmax.f32 %v1181, 0.0
        %v1220 = vmax.f32 %v1186, 0.0
        %v1221 = vmax.f32 %v1191, 0.0
        %v1222 = vmax.f32 %v1196, 0.0
        %v1223 = vmax.f32 %v1201, 0.0
        %v1224 = vmax.f32 %v1206, 0.0
        %v1225 = vld [vmem:[#allocation5 + $0x190] sm:$0xff]
        %v1226 = vld [vmem:[#allocation5 + $0x198] sm:$0xff]
        %v1227 = vld [vmem:[#allocation5 + $0x1a0] sm:$0xff]
        %v1228 = vld [vmem:[#allocation5 + $0x1a8] sm:$0xff]
        %v1229 = vld [vmem:[#allocation5 + $0x1b0] sm:$0xff]
        %v1230 = vld [vmem:[#allocation5 + $0x1b8] sm:$0xff]
        %v1231 = vld [vmem:[#allocation5 + $0x1c0] sm:$0xff]
        %v1232 = vld [vmem:[#allocation5 + $0x1c8] sm:$0xff]
        %s1233 = scalar_lea.vmem [#allocation5], 469
        %v1234 = vld [vmem:[%s1233] ss:$8 sm:$0x3]
        %v1236 = vlaneseq
        %v1237 = vshrl.u32 %v1236, 7
        %v1238 = vsub.s32 0, %v1237
        %v1239 = vrot.slane %v1234, %v1238
        %v1240 = vlaneseq
        %v1241 = vshrl.u32 %v1240, 7
        %v1242 = vsub.s32 1, %v1241
        %v1243 = vrot.slane %v1234, %v1242
        %v1247 = vsel %vm1015, %v1209, 0
        %v1250 = vsel %vm1015, %v1210, 0
        %v1253 = vsel %vm1015, %v1211, 0
        %v1256 = vsel %vm1015, %v1212, 0
        %v1259 = vsel %vm1015, %v1213, 0
        %v1262 = vsel %vm1015, %v1214, 0
        %v1265 = vsel %vm1015, %v1215, 0
        %v1268 = vsel %vm1015, %v1216, 0
        %v1271 = vsel %vm1015, %v1217, 0
        %v1274 = vsel %vm1015, %v1218, 0
        %v1277 = vsel %vm1015, %v1219, 0
        %v1280 = vsel %vm1015, %v1220, 0
        %v1283 = vsel %vm1015, %v1221, 0
        %v1286 = vsel %vm1015, %v1222, 0
        %v1289 = vsel %vm1015, %v1223, 0
        %v1292 = vsel %vm1015, %v1224, 0
        %1294 = vmatprep.subr.mxu0 %v1226
        %1295 = vmatpush1.msra.mxu0 %v1225
        %1296 = vmatprep.subr.mxu0 %v1228
        %1297 = vmatpush1.msra.mxu0 %v1227
        %1298 = vmatprep.subr.mxu0 %v1230
        %1299 = vmatpush1.msra.mxu0 %v1229
        %1300 = vmatprep.subr.mxu0 %v1232
        %1301 = vmatpush1.msra.mxu0 %v1231
        %1302 = vmatprep.subr.mxu0 0.0
        %1303 = vmatpush1.msra.mxu0 0.0
        %1304 = vmatprep.subr.mxu0 0.0
        %1305 = vmatpush1.msra.mxu0 0.0
        %1306 = vmatprep.subr.mxu0 0.0
        %1307 = vmatpush1.msra.mxu0 0.0
        %1308 = vmatprep.subr.mxu0 0.0
        %1309 = vmatpush1.msra.mxu0 0.0
        %1310 = vmatprep.subr.mxu0 0.0
        %1311 = vmatpush1.msra.mxu0 0.0
        %1312 = vmatprep.subr.mxu0 0.0
        %1313 = vmatpush1.msra.mxu0 0.0
        %1314 = vmatprep.subr.mxu0 0.0
        %1315 = vmatpush1.msra.mxu0 0.0
        %1316 = vmatprep.subr.mxu0 0.0
        %1317 = vmatpush1.msra.mxu0 0.0
        %1318 = vmatprep.subr.mxu0 0.0
        %1319 = vmatpush1.msra.mxu0 0.0
        %1320 = vmatprep.subr.mxu0 0.0
        %1321 = vmatpush1.msra.mxu0 0.0
        %1322 = vmatprep.subr.mxu0 0.0
        %1323 = vmatpush1.msra.mxu0 0.0
        %1324 = vmatprep.subr.mxu0 0.0
        %1325 = vmatpush1.msra.mxu0 0.0
        %1326 = vmatprep.subr.mxu0 0.0
        %1327 = vmatpush1.msra.mxu0 0.0
        %1328 = vmatprep.subr.mxu0 0.0
        %1329 = vmatpush1.msra.mxu0 0.0
        %1330 = vmatprep.subr.mxu0 0.0
        %1331 = vmatpush1.msra.mxu0 0.0
        %1332 = vmatprep.subr.mxu0 0.0
        %1333 = vmatpush1.msra.mxu0 0.0
        %1334 = vmatprep.subr.mxu0 0.0
        %1335 = vmatpush1.msra.mxu0 0.0
        %1336 = vmatprep.subr.mxu0 0.0
        %1337 = vmatpush1.msra.mxu0 0.0
        %1338 = vmatprep.subr.mxu0 0.0
        %1339 = vmatpush1.msra.mxu0 0.0
        %1340 = vmatprep.subr.mxu0 0.0
        %1341 = vmatpush1.msra.mxu0 0.0
        %1342 = vmatprep.subr.mxu0 0.0
        %1343 = vmatpush1.msra.mxu0 0.0
        %1344 = vmatprep.subr.mxu0 0.0
        %1345 = vmatpush1.msra.mxu0 0.0
        %1346 = vmatprep.subr.mxu0 0.0
        %1347 = vmatpush1.msra.mxu0 0.0
        %1348 = vmatprep.subr.mxu0 0.0
        %1349 = vmatpush1.msra.mxu0 0.0
        %1350 = vmatprep.subr.mxu0 0.0
        %1351 = vmatpush1.msra.mxu0 0.0
        %1352 = vmatprep.subr.mxu0 0.0
        %1353 = vmatpush1.msra.mxu0 0.0
        %1354 = vmatprep.subr.mxu0 0.0
        %1355 = vmatpush1.msra.mxu0 0.0
        %1356 = vmatprep.subr.mxu0 0.0
        %1357 = vmatpush1.msra.mxu0 0.0
        %1358 = vmatprep.mubr.f32.mxu0 0.0
        %1359 = vmatmul.mubr.f32.gmra.mrb[0].mxu0 %v1247
        %v1360 = vpop.f32.mrb[0].mxu0
        %v1361 = vadd.f32 %v1239, %v1360
        %v1362 = vpop.f32.mrb[0].mxu0
        %v1363 = vadd.f32 %v1243, %v1362
        %1364 = vmatprep.mubr.f32.mxu0 0.0
        %1365 = vmatmul.mubr.f32.gmra.mrb[0].mxu0 %v1250
        %v1366 = vpop.f32.mrb[0].mxu0
        %v1367 = vadd.f32 %v1239, %v1366
        %v1368 = vpop.f32.mrb[0].mxu0
        %v1369 = vadd.f32 %v1243, %v1368
        %1370 = vmatprep.mubr.f32.mxu0 0.0
        %1371 = vmatmul.mubr.f32.gmra.mrb[0].mxu0 %v1253
        %v1372 = vpop.f32.mrb[0].mxu0
        %v1373 = vadd.f32 %v1239, %v1372
        %v1374 = vpop.f32.mrb[0].mxu0
        %v1375 = vadd.f32 %v1243, %v1374
        %1376 = vmatprep.mubr.f32.mxu0 0.0
        %1377 = vmatmul.mubr.f32.gmra.mrb[0].mxu0 %v1256
        %v1378 = vpop.f32.mrb[0].mxu0
        %v1379 = vadd.f32 %v1239, %v1378
        %v1380 = vpop.f32.mrb[0].mxu0
        %v1381 = vadd.f32 %v1243, %v1380
        %1382 = vmatprep.mubr.f32.mxu0 0.0
        %1383 = vmatmul.mubr.f32.gmra.mrb[0].mxu0 %v1259
        %v1384 = vpop.f32.mrb[0].mxu0
        %v1385 = vadd.f32 %v1239, %v1384
        %v1386 = vpop.f32.mrb[0].mxu0
        %v1387 = vadd.f32 %v1243, %v1386
        %1388 = vmatprep.mubr.f32.mxu0 0.0
        %1389 = vmatmul.mubr.f32.gmra.mrb[0].mxu0 %v1262
        %v1390 = vpop.f32.mrb[0].mxu0
        %v1391 = vadd.f32 %v1239, %v1390
        %v1392 = vpop.f32.mrb[0].mxu0
        %v1393 = vadd.f32 %v1243, %v1392
        %1394 = vmatprep.mubr.f32.mxu0 0.0
        %1395 = vmatmul.mubr.f32.gmra.mrb[0].mxu0 %v1265
        %v1396 = vpop.f32.mrb[0].mxu0
        %v1397 = vadd.f32 %v1239, %v1396
        %v1398 = vpop.f32.mrb[0].mxu0
        %v1399 = vadd.f32 %v1243, %v1398
        %1400 = vmatprep.mubr.f32.mxu0 0.0
        %1401 = vmatmul.mubr.f32.gmra.mrb[0].mxu0 %v1268
        %v1402 = vpop.f32.mrb[0].mxu0
        %v1403 = vadd.f32 %v1239, %v1402
        %v1404 = vpop.f32.mrb[0].mxu0
        %v1405 = vadd.f32 %v1243, %v1404
        %1406 = vmatprep.mubr.f32.mxu0 0.0
        %1407 = vmatmul.mubr.f32.gmra.mrb[0].mxu0 %v1271
        %v1408 = vpop.f32.mrb[0].mxu0
        %v1409 = vadd.f32 %v1239, %v1408
        %v1410 = vpop.f32.mrb[0].mxu0
        %v1411 = vadd.f32 %v1243, %v1410
        %1412 = vmatprep.mubr.f32.mxu0 0.0
        %1413 = vmatmul.mubr.f32.gmra.mrb[0].mxu0 %v1274
        %v1414 = vpop.f32.mrb[0].mxu0
        %v1415 = vadd.f32 %v1239, %v1414
        %v1416 = vpop.f32.mrb[0].mxu0
        %v1417 = vadd.f32 %v1243, %v1416
        %1418 = vmatprep.mubr.f32.mxu0 0.0
        %1419 = vmatmul.mubr.f32.gmra.mrb[0].mxu0 %v1277
        %v1420 = vpop.f32.mrb[0].mxu0
        %v1421 = vadd.f32 %v1239, %v1420
        %v1422 = vpop.f32.mrb[0].mxu0
        %v1423 = vadd.f32 %v1243, %v1422
        %1424 = vmatprep.mubr.f32.mxu0 0.0
        %1425 = vmatmul.mubr.f32.gmra.mrb[0].mxu0 %v1280
        %v1426 = vpop.f32.mrb[0].mxu0
        %v1427 = vadd.f32 %v1239, %v1426
        %v1428 = vpop.f32.mrb[0].mxu0
        %v1429 = vadd.f32 %v1243, %v1428
        %1430 = vmatprep.mubr.f32.mxu0 0.0
        %1431 = vmatmul.mubr.f32.gmra.mrb[0].mxu0 %v1283
        %v1432 = vpop.f32.mrb[0].mxu0
        %v1433 = vadd.f32 %v1239, %v1432
        %v1434 = vpop.f32.mrb[0].mxu0
        %v1435 = vadd.f32 %v1243, %v1434
        %1436 = vmatprep.mubr.f32.mxu0 0.0
        %1437 = vmatmul.mubr.f32.gmra.mrb[0].mxu0 %v1286
        %v1438 = vpop.f32.mrb[0].mxu0
        %v1439 = vadd.f32 %v1239, %v1438
        %v1440 = vpop.f32.mrb[0].mxu0
        %v1441 = vadd.f32 %v1243, %v1440
        %1442 = vmatprep.mubr.f32.mxu0 0.0
        %1443 = vmatmul.mubr.f32.gmra.mrb[0].mxu0 %v1289
        %v1444 = vpop.f32.mrb[0].mxu0
        %v1445 = vadd.f32 %v1239, %v1444
        %v1446 = vpop.f32.mrb[0].mxu0
        %v1447 = vadd.f32 %v1243, %v1446
        %1448 = vmatprep.mubr.f32.mxu0 0.0
        %1449 = vmatmul.mubr.f32.gmra.mrb[0].mxu0 %v1292
        %v1450 = vpop.f32.mrb[0].mxu0
        %v1451 = vadd.f32 %v1239, %v1450
        %v1452 = vpop.f32.mrb[0].mxu0
        %v1453 = vadd.f32 %v1243, %v1452
        %1454 = vdwg.mxu0
        %v1455 = vxor.u32 %v1361, 2147483648
        %v1456 = vxor.u32 %v1363, 2147483648
        %v1457 = vxor.u32 %v1367, 2147483648
        %v1458 = vxor.u32 %v1369, 2147483648
        %v1459 = vxor.u32 %v1373, 2147483648
        %v1460 = vxor.u32 %v1375, 2147483648
        %v1461 = vxor.u32 %v1379, 2147483648
        %v1462 = vxor.u32 %v1381, 2147483648
        %v1463 = vxor.u32 %v1385, 2147483648
        %v1464 = vxor.u32 %v1387, 2147483648
        %v1465 = vxor.u32 %v1391, 2147483648
        %v1466 = vxor.u32 %v1393, 2147483648
        %v1467 = vxor.u32 %v1397, 2147483648
        %v1468 = vxor.u32 %v1399, 2147483648
        %v1469 = vxor.u32 %v1403, 2147483648
        %v1470 = vxor.u32 %v1405, 2147483648
        %v1471 = vxor.u32 %v1409, 2147483648
        %v1472 = vxor.u32 %v1411, 2147483648
        %v1473 = vxor.u32 %v1415, 2147483648
        %v1474 = vxor.u32 %v1417, 2147483648
        %v1475 = vxor.u32 %v1421, 2147483648
        %v1476 = vxor.u32 %v1423, 2147483648
        %v1477 = vxor.u32 %v1427, 2147483648
        %v1478 = vxor.u32 %v1429, 2147483648
        %v1479 = vxor.u32 %v1433, 2147483648
        %v1480 = vxor.u32 %v1435, 2147483648
        %v1481 = vxor.u32 %v1439, 2147483648
        %v1482 = vxor.u32 %v1441, 2147483648
        %v1483 = vxor.u32 %v1445, 2147483648
        %v1484 = vxor.u32 %v1447, 2147483648
        %v1485 = vxor.u32 %v1451, 2147483648
        %v1486 = vxor.u32 %v1453, 2147483648
        %v1487 = vmul.f32 %v1455, 1.442695
        %v1488 = vpow.pop %v1487
        %v1489 = vmul.f32 %v1456, 1.442695
        %v1490 = vpow.pop %v1489
        %v1491 = vmul.f32 %v1457, 1.442695
        %v1492 = vpow.pop %v1491
        %v1493 = vmul.f32 %v1458, 1.442695
        %v1494 = vpow.pop %v1493
        %v1495 = vmul.f32 %v1459, 1.442695
        %v1496 = vpow.pop %v1495
        %v1497 = vmul.f32 %v1460, 1.442695
        %v1498 = vpow.pop %v1497
        %v1499 = vmul.f32 %v1461, 1.442695
        %v1500 = vpow.pop %v1499
        %v1501 = vmul.f32 %v1462, 1.442695
        %v1502 = vpow.pop %v1501
        %v1503 = vmul.f32 %v1463, 1.442695
        %v1504 = vpow.pop %v1503
        %v1505 = vmul.f32 %v1464, 1.442695
        %v1506 = vpow.pop %v1505
        %v1507 = vmul.f32 %v1465, 1.442695
        %v1508 = vpow.pop %v1507
        %v1509 = vmul.f32 %v1466, 1.442695
        %v1510 = vpow.pop %v1509
        %v1511 = vmul.f32 %v1467, 1.442695
        %v1512 = vpow.pop %v1511
        %v1513 = vmul.f32 %v1468, 1.442695
        %v1514 = vpow.pop %v1513
        %v1515 = vmul.f32 %v1469, 1.442695
        %v1516 = vpow.pop %v1515
        %v1517 = vmul.f32 %v1470, 1.442695
        %v1518 = vpow.pop %v1517
        %v1519 = vmul.f32 %v1471, 1.442695
        %v1520 = vpow.pop %v1519
        %v1521 = vmul.f32 %v1472, 1.442695
        %v1522 = vpow.pop %v1521
        %v1523 = vmul.f32 %v1473, 1.442695
        %v1524 = vpow.pop %v1523
        %v1525 = vmul.f32 %v1474, 1.442695
        %v1526 = vpow.pop %v1525
        %v1527 = vmul.f32 %v1475, 1.442695
        %v1528 = vpow.pop %v1527
        %v1529 = vmul.f32 %v1476, 1.442695
        %v1530 = vpow.pop %v1529
        %v1531 = vmul.f32 %v1477, 1.442695
        %v1532 = vpow.pop %v1531
        %v1533 = vmul.f32 %v1478, 1.442695
        %v1534 = vpow.pop %v1533
        %v1535 = vmul.f32 %v1479, 1.442695
        %v1536 = vpow.pop %v1535
        %v1537 = vmul.f32 %v1480, 1.442695
        %v1538 = vpow.pop %v1537
        %v1539 = vmul.f32 %v1481, 1.442695
        %v1540 = vpow.pop %v1539
        %v1541 = vmul.f32 %v1482, 1.442695
        %v1542 = vpow.pop %v1541
        %v1543 = vmul.f32 %v1483, 1.442695
        %v1544 = vpow.pop %v1543
        %v1545 = vmul.f32 %v1484, 1.442695
        %v1546 = vpow.pop %v1545
        %v1547 = vmul.f32 %v1485, 1.442695
        %v1548 = vpow.pop %v1547
        %v1549 = vmul.f32 %v1486, 1.442695
        %v1550 = vpow.pop %v1549
        %v1551 = vadd.f32 %v1488, 1.0
        %v1552 = vadd.f32 %v1490, 1.0
        %v1553 = vadd.f32 %v1492, 1.0
        %v1554 = vadd.f32 %v1494, 1.0
        %v1555 = vadd.f32 %v1496, 1.0
        %v1556 = vadd.f32 %v1498, 1.0
        %v1557 = vadd.f32 %v1500, 1.0
        %v1558 = vadd.f32 %v1502, 1.0
        %v1559 = vadd.f32 %v1504, 1.0
        %v1560 = vadd.f32 %v1506, 1.0
        %v1561 = vadd.f32 %v1508, 1.0
        %v1562 = vadd.f32 %v1510, 1.0
        %v1563 = vadd.f32 %v1512, 1.0
        %v1564 = vadd.f32 %v1514, 1.0
        %v1565 = vadd.f32 %v1516, 1.0
        %v1566 = vadd.f32 %v1518, 1.0
        %v1567 = vadd.f32 %v1520, 1.0
        %v1568 = vadd.f32 %v1522, 1.0
        %v1569 = vadd.f32 %v1524, 1.0
        %v1570 = vadd.f32 %v1526, 1.0
        %v1571 = vadd.f32 %v1528, 1.0
        %v1572 = vadd.f32 %v1530, 1.0
        %v1573 = vadd.f32 %v1532, 1.0
        %v1574 = vadd.f32 %v1534, 1.0
        %v1575 = vadd.f32 %v1536, 1.0
        %v1576 = vadd.f32 %v1538, 1.0
        %v1577 = vadd.f32 %v1540, 1.0
        %v1578 = vadd.f32 %v1542, 1.0
        %v1579 = vadd.f32 %v1544, 1.0
        %v1580 = vadd.f32 %v1546, 1.0
        %v1581 = vadd.f32 %v1548, 1.0
        %v1582 = vadd.f32 %v1550, 1.0
        %v1583 = vrcp.pop %v1551
        %v1584 = vmul.f32 1.0, %v1583
        %v1585 = vrcp.pop %v1552
        %v1586 = vmul.f32 1.0, %v1585
        %v1587 = vrcp.pop %v1553
        %v1588 = vmul.f32 1.0, %v1587
        %v1589 = vrcp.pop %v1554
        %v1590 = vmul.f32 1.0, %v1589
        %v1591 = vrcp.pop %v1555
        %v1592 = vmul.f32 1.0, %v1591
        %v1593 = vrcp.pop %v1556
        %v1594 = vmul.f32 1.0, %v1593
        %v1595 = vrcp.pop %v1557
        %v1596 = vmul.f32 1.0, %v1595
        %v1597 = vrcp.pop %v1558
        %v1598 = vmul.f32 1.0, %v1597
        %v1599 = vrcp.pop %v1559
        %v1600 = vmul.f32 1.0, %v1599
        %v1601 = vrcp.pop %v1560
        %v1602 = vmul.f32 1.0, %v1601
        %v1603 = vrcp.pop %v1561
        %v1604 = vmul.f32 1.0, %v1603
        %v1605 = vrcp.pop %v1562
        %v1606 = vmul.f32 1.0, %v1605
        %v1607 = vrcp.pop %v1563
        %v1608 = vmul.f32 1.0, %v1607
        %v1609 = vrcp.pop %v1564
        %v1610 = vmul.f32 1.0, %v1609
        %v1611 = vrcp.pop %v1565
        %v1612 = vmul.f32 1.0, %v1611
        %v1613 = vrcp.pop %v1566
        %v1614 = vmul.f32 1.0, %v1613
        %v1615 = vrcp.pop %v1567
        %v1616 = vmul.f32 1.0, %v1615
        %v1617 = vrcp.pop %v1568
        %v1618 = vmul.f32 1.0, %v1617
        %v1619 = vrcp.pop %v1569
        %v1620 = vmul.f32 1.0, %v1619
        %v1621 = vrcp.pop %v1570
        %v1622 = vmul.f32 1.0, %v1621
        %v1623 = vrcp.pop %v1571
        %v1624 = vmul.f32 1.0, %v1623
        %v1625 = vrcp.pop %v1572
        %v1626 = vmul.f32 1.0, %v1625
        %v1627 = vrcp.pop %v1573
        %v1628 = vmul.f32 1.0, %v1627
        %v1629 = vrcp.pop %v1574
        %v1630 = vmul.f32 1.0, %v1629
        %v1631 = vrcp.pop %v1575
        %v1632 = vmul.f32 1.0, %v1631
        %v1633 = vrcp.pop %v1576
        %v1634 = vmul.f32 1.0, %v1633
        %v1635 = vrcp.pop %v1577
        %v1636 = vmul.f32 1.0, %v1635
        %v1637 = vrcp.pop %v1578
        %v1638 = vmul.f32 1.0, %v1637
        %v1639 = vrcp.pop %v1579
        %v1640 = vmul.f32 1.0, %v1639
        %v1641 = vrcp.pop %v1580
        %v1642 = vmul.f32 1.0, %v1641
        %v1643 = vrcp.pop %v1581
        %v1644 = vmul.f32 1.0, %v1643
        %v1645 = vrcp.pop %v1582
        %v1646 = vmul.f32 1.0, %v1645
        %1647 = vmatprep.subr.mxu0 0.0
        %1648 = vmatpush1.msra.mxu0 %v195
        %1649 = vmatprep.subr.mxu0 0.0
        %1650 = vmatpush1.msra.mxu0 %v196
        %1651 = vmatprep.subr.mxu0 0.0
        %1652 = vmatpush1.msra.mxu0 %v197
        %1653 = vmatprep.subr.mxu0 0.0
        %1654 = vmatpush1.msra.mxu0 %v198
        %1655 = vmatprep.subr.mxu0 0.0
        %1656 = vmatpush1.msra.mxu0 %v199
        %1657 = vmatprep.subr.mxu0 0.0
        %1658 = vmatpush1.msra.mxu0 %v200
        %1659 = vmatprep.subr.mxu0 0.0
        %1660 = vmatpush1.msra.mxu0 %v201
        %1661 = vmatprep.subr.mxu0 0.0
        %1662 = vmatpush1.msra.mxu0 %v202
        %1663 = vmatprep.subr.mxu0 0.0
        %1664 = vmatpush1.msra.mxu0 %v203
        %1665 = vmatprep.subr.mxu0 0.0
        %1666 = vmatpush1.msra.mxu0 %v204
        %1667 = vmatprep.subr.mxu0 0.0
        %1668 = vmatpush1.msra.mxu0 %v205
        %1669 = vmatprep.subr.mxu0 0.0
        %1670 = vmatpush1.msra.mxu0 %v206
        %1671 = vmatprep.subr.mxu0 0.0
        %1672 = vmatpush1.msra.mxu0 %v207
        %1673 = vmatprep.subr.mxu0 0.0
        %1674 = vmatpush1.msra.mxu0 %v208
        %1675 = vmatprep.subr.mxu0 0.0
        %1676 = vmatpush1.msra.mxu0 %v209
        %1677 = vmatprep.subr.mxu0 0.0
        %1678 = vmatpush1.msra.mxu0 %v210
        %1679 = vmatprep.subr.mxu0 0.0
        %1680 = vmatpush1.msra.mxu0 0.0
        %1681 = vmatprep.subr.mxu0 0.0
        %1682 = vmatpush1.msra.mxu0 0.0
        %1683 = vmatprep.subr.mxu0 0.0
        %1684 = vmatpush1.msra.mxu0 0.0
        %1685 = vmatprep.subr.mxu0 0.0
        %1686 = vmatpush1.msra.mxu0 0.0
        %1687 = vmatprep.subr.mxu0 0.0
        %1688 = vmatpush1.msra.mxu0 0.0
        %1689 = vmatprep.subr.mxu0 0.0
        %1690 = vmatpush1.msra.mxu0 0.0
        %1691 = vmatprep.subr.mxu0 0.0
        %1692 = vmatpush1.msra.mxu0 0.0
        %1693 = vmatprep.subr.mxu0 0.0
        %1694 = vmatpush1.msra.mxu0 0.0
        %1695 = vmatprep.subr.mxu0 0.0
        %1696 = vmatpush1.msra.mxu0 0.0
        %1697 = vmatprep.subr.mxu0 0.0
        %1698 = vmatpush1.msra.mxu0 0.0
        %1699 = vmatprep.subr.mxu0 0.0
        %1700 = vmatpush1.msra.mxu0 0.0
        %1701 = vmatprep.subr.mxu0 0.0
        %1702 = vmatpush1.msra.mxu0 0.0
        %1703 = vmatprep.subr.mxu0 0.0
        %1704 = vmatpush1.msra.mxu0 0.0
        %1705 = vmatprep.subr.mxu0 0.0
        %1706 = vmatpush1.msra.mxu0 0.0
        %1707 = vmatprep.subr.mxu0 0.0
        %1708 = vmatpush1.msra.mxu0 0.0
        %1709 = vmatprep.subr.mxu0 0.0
        %1710 = vmatpush1.msra.mxu0 0.0
        %1711 = vmatprep.mubr.f32.mxu0 0.0
        %1712 = vmatmul.mubr.f32.gmra.mrb[0].mxu0 %v1584
        %v1713 = vpop.f32.mrb[0].mxu0
        %v1714 = vadd.f32 %v211, %v1713
        %v1715 = vpop.f32.mrb[0].mxu0
        %1716 = vmatprep.mubr.f32.mxu0 0.0
        %1717 = vmatmul.mubr.f32.gmra.mrb[0].mxu0 %v1588
        %v1718 = vpop.f32.mrb[0].mxu0
        %v1719 = vadd.f32 %v211, %v1718
        %v1720 = vpop.f32.mrb[0].mxu0
        %1721 = vmatprep.mubr.f32.mxu0 0.0
        %1722 = vmatmul.mubr.f32.gmra.mrb[0].mxu0 %v1592
        %v1723 = vpop.f32.mrb[0].mxu0
        %v1724 = vadd.f32 %v211, %v1723
        %v1725 = vpop.f32.mrb[0].mxu0
        %1726 = vmatprep.mubr.f32.mxu0 0.0
        %1727 = vmatmul.mubr.f32.gmra.mrb[0].mxu0 %v1596
        %v1728 = vpop.f32.mrb[0].mxu0
        %v1729 = vadd.f32 %v211, %v1728
        %v1730 = vpop.f32.mrb[0].mxu0
        %1731 = vmatprep.mubr.f32.mxu0 0.0
        %1732 = vmatmul.mubr.f32.gmra.mrb[0].mxu0 %v1600
        %v1733 = vpop.f32.mrb[0].mxu0
        %v1734 = vadd.f32 %v211, %v1733
        %v1735 = vpop.f32.mrb[0].mxu0
        %1736 = vmatprep.mubr.f32.mxu0 0.0
        %1737 = vmatmul.mubr.f32.gmra.mrb[0].mxu0 %v1604
        %v1738 = vpop.f32.mrb[0].mxu0
        %v1739 = vadd.f32 %v211, %v1738
        %v1740 = vpop.f32.mrb[0].mxu0
        %1741 = vmatprep.mubr.f32.mxu0 0.0
        %1742 = vmatmul.mubr.f32.gmra.mrb[0].mxu0 %v1608
        %v1743 = vpop.f32.mrb[0].mxu0
        %v1744 = vadd.f32 %v211, %v1743
        %v1745 = vpop.f32.mrb[0].mxu0
        %1746 = vmatprep.mubr.f32.mxu0 0.0
        %1747 = vmatmul.mubr.f32.gmra.mrb[0].mxu0 %v1612
        %v1748 = vpop.f32.mrb[0].mxu0
        %v1749 = vadd.f32 %v211, %v1748
        %v1750 = vpop.f32.mrb[0].mxu0
        %1751 = vmatprep.mubr.f32.mxu0 0.0
        %1752 = vmatmul.mubr.f32.gmra.mrb[0].mxu0 %v1616
        %v1753 = vpop.f32.mrb[0].mxu0
        %v1754 = vadd.f32 %v211, %v1753
        %v1755 = vpop.f32.mrb[0].mxu0
        %1756 = vmatprep.mubr.f32.mxu0 0.0
        %1757 = vmatmul.mubr.f32.gmra.mrb[0].mxu0 %v1620
        %v1758 = vpop.f32.mrb[0].mxu0
        %v1759 = vadd.f32 %v211, %v1758
        %v1760 = vpop.f32.mrb[0].mxu0
        %1761 = vmatprep.mubr.f32.mxu0 0.0
        %1762 = vmatmul.mubr.f32.gmra.mrb[0].mxu0 %v1624
        %v1763 = vpop.f32.mrb[0].mxu0
        %v1764 = vadd.f32 %v211, %v1763
        %v1765 = vpop.f32.mrb[0].mxu0
        %1766 = vmatprep.mubr.f32.mxu0 0.0
        %1767 = vmatmul.mubr.f32.gmra.mrb[0].mxu0 %v1628
        %v1768 = vpop.f32.mrb[0].mxu0
        %v1769 = vadd.f32 %v211, %v1768
        %v1770 = vpop.f32.mrb[0].mxu0
        %1771 = vmatprep.mubr.f32.mxu0 0.0
        %1772 = vmatmul.mubr.f32.gmra.mrb[0].mxu0 %v1632
        %v1773 = vpop.f32.mrb[0].mxu0
        %v1774 = vadd.f32 %v211, %v1773
        %v1775 = vpop.f32.mrb[0].mxu0
        %1776 = vmatprep.mubr.f32.mxu0 0.0
        %1777 = vmatmul.mubr.f32.gmra.mrb[0].mxu0 %v1636
        %v1778 = vpop.f32.mrb[0].mxu0
        %v1779 = vadd.f32 %v211, %v1778
        %v1780 = vpop.f32.mrb[0].mxu0
        %1781 = vmatprep.mubr.f32.mxu0 0.0
        %1782 = vmatmul.mubr.f32.gmra.mrb[0].mxu0 %v1640
        %v1783 = vpop.f32.mrb[0].mxu0
        %v1784 = vadd.f32 %v211, %v1783
        %v1785 = vpop.f32.mrb[0].mxu0
        %1786 = vmatprep.mubr.f32.mxu0 0.0
        %1787 = vmatmul.mubr.f32.gmra.mrb[0].mxu0 %v1644
        %v1788 = vpop.f32.mrb[0].mxu0
        %v1789 = vadd.f32 %v211, %v1788
        %v1790 = vpop.f32.mrb[0].mxu0
        %1791 = vdwg.mxu0
        %v1792 = vmax.f32 %v1714, 0.0
        %v1793 = vmax.f32 %v1719, 0.0
        %v1794 = vmax.f32 %v1724, 0.0
        %v1795 = vmax.f32 %v1729, 0.0
        %v1796 = vmax.f32 %v1734, 0.0
        %v1797 = vmax.f32 %v1739, 0.0
        %v1798 = vmax.f32 %v1744, 0.0
        %v1799 = vmax.f32 %v1749, 0.0
        %v1800 = vmax.f32 %v1754, 0.0
        %v1801 = vmax.f32 %v1759, 0.0
        %v1802 = vmax.f32 %v1764, 0.0
        %v1803 = vmax.f32 %v1769, 0.0
        %v1804 = vmax.f32 %v1774, 0.0
        %v1805 = vmax.f32 %v1779, 0.0
        %v1806 = vmax.f32 %v1784, 0.0
        %v1807 = vmax.f32 %v1789, 0.0
        %v1809 = vsel %vm376, %v1792, 0
        %v1812 = vsel %vm376, %v1793, 0
        %v1815 = vsel %vm376, %v1794, 0
        %v1818 = vsel %vm376, %v1795, 0
        %v1821 = vsel %vm376, %v1796, 0
        %v1824 = vsel %vm376, %v1797, 0
        %v1827 = vsel %vm376, %v1798, 0
        %v1830 = vsel %vm376, %v1799, 0
        %v1833 = vsel %vm376, %v1800, 0
        %v1836 = vsel %vm376, %v1801, 0
        %v1839 = vsel %vm376, %v1802, 0
        %v1842 = vsel %vm376, %v1803, 0
        %v1845 = vsel %vm376, %v1804, 0
        %v1848 = vsel %vm376, %v1805, 0
        %v1851 = vsel %vm376, %v1806, 0
        %v1854 = vsel %vm376, %v1807, 0
        %1856 = vmatprep.subr.mxu0 0.0
        %1857 = vmatpush1.msra.mxu0 %v373
        %1858 = vmatprep.subr.mxu0 0.0
        %1859 = vmatpush1.msra.mxu0 %v374
        %1860 = vmatprep.subr.mxu0 0.0
        %1861 = vmatpush1.msra.mxu0 0.0
        %1862 = vmatprep.subr.mxu0 0.0
        %1863 = vmatpush1.msra.mxu0 0.0
        %1864 = vmatprep.subr.mxu0 0.0
        %1865 = vmatpush1.msra.mxu0 0.0
        %1866 = vmatprep.subr.mxu0 0.0
        %1867 = vmatpush1.msra.mxu0 0.0
        %1868 = vmatprep.subr.mxu0 0.0
        %1869 = vmatpush1.msra.mxu0 0.0
        %1870 = vmatprep.subr.mxu0 0.0
        %1871 = vmatpush1.msra.mxu0 0.0
        %1872 = vmatprep.subr.mxu0 0.0
        %1873 = vmatpush1.msra.mxu0 0.0
        %1874 = vmatprep.subr.mxu0 0.0
        %1875 = vmatpush1.msra.mxu0 0.0
        %1876 = vmatprep.subr.mxu0 0.0
        %1877 = vmatpush1.msra.mxu0 0.0
        %1878 = vmatprep.subr.mxu0 0.0
        %1879 = vmatpush1.msra.mxu0 0.0
        %1880 = vmatprep.subr.mxu0 0.0
        %1881 = vmatpush1.msra.mxu0 0.0
        %1882 = vmatprep.subr.mxu0 0.0
        %1883 = vmatpush1.msra.mxu0 0.0
        %1884 = vmatprep.subr.mxu0 0.0
        %1885 = vmatpush1.msra.mxu0 0.0
        %1886 = vmatprep.subr.mxu0 0.0
        %1887 = vmatpush1.msra.mxu0 0.0
        %1888 = vmatprep.subr.mxu0 0.0
        %1889 = vmatpush1.msra.mxu0 0.0
        %1890 = vmatprep.subr.mxu0 0.0
        %1891 = vmatpush1.msra.mxu0 0.0
        %1892 = vmatprep.subr.mxu0 0.0
        %1893 = vmatpush1.msra.mxu0 0.0
        %1894 = vmatprep.subr.mxu0 0.0
        %1895 = vmatpush1.msra.mxu0 0.0
        %1896 = vmatprep.subr.mxu0 0.0
        %1897 = vmatpush1.msra.mxu0 0.0
        %1898 = vmatprep.subr.mxu0 0.0
        %1899 = vmatpush1.msra.mxu0 0.0
        %1900 = vmatprep.subr.mxu0 0.0
        %1901 = vmatpush1.msra.mxu0 0.0
        %1902 = vmatprep.subr.mxu0 0.0
        %1903 = vmatpush1.msra.mxu0 0.0
        %1904 = vmatprep.subr.mxu0 0.0
        %1905 = vmatpush1.msra.mxu0 0.0
        %1906 = vmatprep.subr.mxu0 0.0
        %1907 = vmatpush1.msra.mxu0 0.0
        %1908 = vmatprep.subr.mxu0 0.0
        %1909 = vmatpush1.msra.mxu0 0.0
        %1910 = vmatprep.subr.mxu0 0.0
        %1911 = vmatpush1.msra.mxu0 0.0
        %1912 = vmatprep.subr.mxu0 0.0
        %1913 = vmatpush1.msra.mxu0 0.0
        %1914 = vmatprep.subr.mxu0 0.0
        %1915 = vmatpush1.msra.mxu0 0.0
        %1916 = vmatprep.subr.mxu0 0.0
        %1917 = vmatpush1.msra.mxu0 0.0
        %1918 = vmatprep.subr.mxu0 0.0
        %1919 = vmatpush1.msra.mxu0 0.0
        %1920 = vmatprep.mubr.f32.mxu0 0.0
        %1921 = vmatmul.mubr.f32.gmra.mrb[0].mxu0 %v1809
        %v1922 = vpop.f32.mrb[0].mxu0
        %v1923 = vadd.f32 %v375, %v1922
        %v1924 = vpop.f32.mrb[0].mxu0
        %1925 = vmatprep.mubr.f32.mxu0 0.0
        %1926 = vmatmul.mubr.f32.gmra.mrb[0].mxu0 %v1812
        %v1927 = vpop.f32.mrb[0].mxu0
        %v1928 = vadd.f32 %v375, %v1927
        %v1929 = vpop.f32.mrb[0].mxu0
        %1930 = vmatprep.mubr.f32.mxu0 0.0
        %1931 = vmatmul.mubr.f32.gmra.mrb[0].mxu0 %v1815
        %v1932 = vpop.f32.mrb[0].mxu0
        %v1933 = vadd.f32 %v375, %v1932
        %v1934 = vpop.f32.mrb[0].mxu0
        %1935 = vmatprep.mubr.f32.mxu0 0.0
        %1936 = vmatmul.mubr.f32.gmra.mrb[0].mxu0 %v1818
        %v1937 = vpop.f32.mrb[0].mxu0
        %v1938 = vadd.f32 %v375, %v1937
        %v1939 = vpop.f32.mrb[0].mxu0
        %1940 = vmatprep.mubr.f32.mxu0 0.0
        %1941 = vmatmul.mubr.f32.gmra.mrb[0].mxu0 %v1821
        %v1942 = vpop.f32.mrb[0].mxu0
        %v1943 = vadd.f32 %v375, %v1942
        %v1944 = vpop.f32.mrb[0].mxu0
        %1945 = vmatprep.mubr.f32.mxu0 0.0
        %1946 = vmatmul.mubr.f32.gmra.mrb[0].mxu0 %v1824
        %v1947 = vpop.f32.mrb[0].mxu0
        %v1948 = vadd.f32 %v375, %v1947
        %v1949 = vpop.f32.mrb[0].mxu0
        %1950 = vmatprep.mubr.f32.mxu0 0.0
        %1951 = vmatmul.mubr.f32.gmra.mrb[0].mxu0 %v1827
        %v1952 = vpop.f32.mrb[0].mxu0
        %v1953 = vadd.f32 %v375, %v1952
        %v1954 = vpop.f32.mrb[0].mxu0
        %1955 = vmatprep.mubr.f32.mxu0 0.0
        %1956 = vmatmul.mubr.f32.gmra.mrb[0].mxu0 %v1830
        %v1957 = vpop.f32.mrb[0].mxu0
        %v1958 = vadd.f32 %v375, %v1957
        %v1959 = vpop.f32.mrb[0].mxu0
        %1960 = vmatprep.mubr.f32.mxu0 0.0
        %1961 = vmatmul.mubr.f32.gmra.mrb[0].mxu0 %v1833
        %v1962 = vpop.f32.mrb[0].mxu0
        %v1963 = vadd.f32 %v375, %v1962
        %v1964 = vpop.f32.mrb[0].mxu0
        %1965 = vmatprep.mubr.f32.mxu0 0.0
        %1966 = vmatmul.mubr.f32.gmra.mrb[0].mxu0 %v1836
        %v1967 = vpop.f32.mrb[0].mxu0
        %v1968 = vadd.f32 %v375, %v1967
        %v1969 = vpop.f32.mrb[0].mxu0
        %1970 = vmatprep.mubr.f32.mxu0 0.0
        %1971 = vmatmul.mubr.f32.gmra.mrb[0].mxu0 %v1839
        %v1972 = vpop.f32.mrb[0].mxu0
        %v1973 = vadd.f32 %v375, %v1972
        %v1974 = vpop.f32.mrb[0].mxu0
        %1975 = vmatprep.mubr.f32.mxu0 0.0
        %1976 = vmatmul.mubr.f32.gmra.mrb[0].mxu0 %v1842
        %v1977 = vpop.f32.mrb[0].mxu0
        %v1978 = vadd.f32 %v375, %v1977
        %v1979 = vpop.f32.mrb[0].mxu0
        %1980 = vmatprep.mubr.f32.mxu0 0.0
        %1981 = vmatmul.mubr.f32.gmra.mrb[0].mxu0 %v1845
        %v1982 = vpop.f32.mrb[0].mxu0
        %v1983 = vadd.f32 %v375, %v1982
        %v1984 = vpop.f32.mrb[0].mxu0
        %1985 = vmatprep.mubr.f32.mxu0 0.0
        %1986 = vmatmul.mubr.f32.gmra.mrb[0].mxu0 %v1848
        %v1987 = vpop.f32.mrb[0].mxu0
        %v1988 = vadd.f32 %v375, %v1987
        %v1989 = vpop.f32.mrb[0].mxu0
        %1990 = vmatprep.mubr.f32.mxu0 0.0
        %1991 = vmatmul.mubr.f32.gmra.mrb[0].mxu0 %v1851
        %v1992 = vpop.f32.mrb[0].mxu0
        %v1993 = vadd.f32 %v375, %v1992
        %v1994 = vpop.f32.mrb[0].mxu0
        %1995 = vmatprep.mubr.f32.mxu0 0.0
        %1996 = vmatmul.mubr.f32.gmra.mrb[0].mxu0 %v1854
        %v1997 = vpop.f32.mrb[0].mxu0
        %v1998 = vadd.f32 %v375, %v1997
        %v1999 = vpop.f32.mrb[0].mxu0
        %2000 = vdwg.mxu0
        %v2001 = vmax.f32 %v1923, 0.0
        %v2002 = vmax.f32 %v1928, 0.0
        %v2003 = vmax.f32 %v1933, 0.0
        %v2004 = vmax.f32 %v1938, 0.0
        %v2005 = vmax.f32 %v1943, 0.0
        %v2006 = vmax.f32 %v1948, 0.0
        %v2007 = vmax.f32 %v1953, 0.0
        %v2008 = vmax.f32 %v1958, 0.0
        %v2009 = vmax.f32 %v1963, 0.0
        %v2010 = vmax.f32 %v1968, 0.0
        %v2011 = vmax.f32 %v1973, 0.0
        %v2012 = vmax.f32 %v1978, 0.0
        %v2013 = vmax.f32 %v1983, 0.0
        %v2014 = vmax.f32 %v1988, 0.0
        %v2015 = vmax.f32 %v1993, 0.0
        %v2016 = vmax.f32 %v1998, 0.0
        %v2018 = vsel %vm376, %v2001, 0
        %v2021 = vsel %vm376, %v2002, 0
        %v2024 = vsel %vm376, %v2003, 0
        %v2027 = vsel %vm376, %v2004, 0
        %v2030 = vsel %vm376, %v2005, 0
        %v2033 = vsel %vm376, %v2006, 0
        %v2036 = vsel %vm376, %v2007, 0
        %v2039 = vsel %vm376, %v2008, 0
        %v2042 = vsel %vm376, %v2009, 0
        %v2045 = vsel %vm376, %v2010, 0
        %v2048 = vsel %vm376, %v2011, 0
        %v2051 = vsel %vm376, %v2012, 0
        %v2054 = vsel %vm376, %v2013, 0
        %v2057 = vsel %vm376, %v2014, 0
        %v2060 = vsel %vm376, %v2015, 0
        %v2063 = vsel %vm376, %v2016, 0
        %2065 = vmatprep.subr.mxu0 0.0
        %2066 = vmatpush1.msra.mxu0 %v586
        %2067 = vmatprep.subr.mxu0 0.0
        %2068 = vmatpush1.msra.mxu0 %v587
        %2069 = vmatprep.subr.mxu0 0.0
        %2070 = vmatpush1.msra.mxu0 0.0
        %2071 = vmatprep.subr.mxu0 0.0
        %2072 = vmatpush1.msra.mxu0 0.0
        %2073 = vmatprep.subr.mxu0 0.0
        %2074 = vmatpush1.msra.mxu0 0.0
        %2075 = vmatprep.subr.mxu0 0.0
        %2076 = vmatpush1.msra.mxu0 0.0
        %2077 = vmatprep.subr.mxu0 0.0
        %2078 = vmatpush1.msra.mxu0 0.0
        %2079 = vmatprep.subr.mxu0 0.0
        %2080 = vmatpush1.msra.mxu0 0.0
        %2081 = vmatprep.subr.mxu0 0.0
        %2082 = vmatpush1.msra.mxu0 0.0
        %2083 = vmatprep.subr.mxu0 0.0
        %2084 = vmatpush1.msra.mxu0 0.0
        %2085 = vmatprep.subr.mxu0 0.0
        %2086 = vmatpush1.msra.mxu0 0.0
        %2087 = vmatprep.subr.mxu0 0.0
        %2088 = vmatpush1.msra.mxu0 0.0
        %2089 = vmatprep.subr.mxu0 0.0
        %2090 = vmatpush1.msra.mxu0 0.0
        %2091 = vmatprep.subr.mxu0 0.0
        %2092 = vmatpush1.msra.mxu0 0.0
        %2093 = vmatprep.subr.mxu0 0.0
        %2094 = vmatpush1.msra.mxu0 0.0
        %2095 = vmatprep.subr.mxu0 0.0
        %2096 = vmatpush1.msra.mxu0 0.0
        %2097 = vmatprep.subr.mxu0 0.0
        %2098 = vmatpush1.msra.mxu0 0.0
        %2099 = vmatprep.subr.mxu0 0.0
        %2100 = vmatpush1.msra.mxu0 0.0
        %2101 = vmatprep.subr.mxu0 0.0
        %2102 = vmatpush1.msra.mxu0 0.0
        %2103 = vmatprep.subr.mxu0 0.0
        %2104 = vmatpush1.msra.mxu0 0.0
        %2105 = vmatprep.subr.mxu0 0.0
        %2106 = vmatpush1.msra.mxu0 0.0
        %2107 = vmatprep.subr.mxu0 0.0
        %2108 = vmatpush1.msra.mxu0 0.0
        %2109 = vmatprep.subr.mxu0 0.0
        %2110 = vmatpush1.msra.mxu0 0.0
        %2111 = vmatprep.subr.mxu0 0.0
        %2112 = vmatpush1.msra.mxu0 0.0
        %2113 = vmatprep.subr.mxu0 0.0
        %2114 = vmatpush1.msra.mxu0 0.0
        %2115 = vmatprep.subr.mxu0 0.0
        %2116 = vmatpush1.msra.mxu0 0.0
        %2117 = vmatprep.subr.mxu0 0.0
        %2118 = vmatpush1.msra.mxu0 0.0
        %2119 = vmatprep.subr.mxu0 0.0
        %2120 = vmatpush1.msra.mxu0 0.0
        %2121 = vmatprep.subr.mxu0 0.0
        %2122 = vmatpush1.msra.mxu0 0.0
        %2123 = vmatprep.subr.mxu0 0.0
        %2124 = vmatpush1.msra.mxu0 0.0
        %2125 = vmatprep.subr.mxu0 0.0
        %2126 = vmatpush1.msra.mxu0 0.0
        %2127 = vmatprep.subr.mxu0 0.0
        %2128 = vmatpush1.msra.mxu0 0.0
        %2129 = vmatprep.mubr.f32.mxu0 0.0
        %2130 = vmatmul.mubr.f32.gmra.mrb[0].mxu0 %v2018
        %v2131 = vpop.f32.mrb[0].mxu0
        %v2132 = vadd.f32 %v588, %v2131
        %v2133 = vpop.f32.mrb[0].mxu0
        %2134 = vmatprep.mubr.f32.mxu0 0.0
        %2135 = vmatmul.mubr.f32.gmra.mrb[0].mxu0 %v2021
        %v2136 = vpop.f32.mrb[0].mxu0
        %v2137 = vadd.f32 %v588, %v2136
        %v2138 = vpop.f32.mrb[0].mxu0
        %2139 = vmatprep.mubr.f32.mxu0 0.0
        %2140 = vmatmul.mubr.f32.gmra.mrb[0].mxu0 %v2024
        %v2141 = vpop.f32.mrb[0].mxu0
        %v2142 = vadd.f32 %v588, %v2141
        %v2143 = vpop.f32.mrb[0].mxu0
        %2144 = vmatprep.mubr.f32.mxu0 0.0
        %2145 = vmatmul.mubr.f32.gmra.mrb[0].mxu0 %v2027
        %v2146 = vpop.f32.mrb[0].mxu0
        %v2147 = vadd.f32 %v588, %v2146
        %v2148 = vpop.f32.mrb[0].mxu0
        %2149 = vmatprep.mubr.f32.mxu0 0.0
        %2150 = vmatmul.mubr.f32.gmra.mrb[0].mxu0 %v2030
        %v2151 = vpop.f32.mrb[0].mxu0
        %v2152 = vadd.f32 %v588, %v2151
        %v2153 = vpop.f32.mrb[0].mxu0
        %2154 = vmatprep.mubr.f32.mxu0 0.0
        %2155 = vmatmul.mubr.f32.gmra.mrb[0].mxu0 %v2033
        %v2156 = vpop.f32.mrb[0].mxu0
        %v2157 = vadd.f32 %v588, %v2156
        %v2158 = vpop.f32.mrb[0].mxu0
        %2159 = vmatprep.mubr.f32.mxu0 0.0
        %2160 = vmatmul.mubr.f32.gmra.mrb[0].mxu0 %v2036
        %v2161 = vpop.f32.mrb[0].mxu0
        %v2162 = vadd.f32 %v588, %v2161
        %v2163 = vpop.f32.mrb[0].mxu0
        %2164 = vmatprep.mubr.f32.mxu0 0.0
        %2165 = vmatmul.mubr.f32.gmra.mrb[0].mxu0 %v2039
        %v2166 = vpop.f32.mrb[0].mxu0
        %v2167 = vadd.f32 %v588, %v2166
        %v2168 = vpop.f32.mrb[0].mxu0
        %2169 = vmatprep.mubr.f32.mxu0 0.0
        %2170 = vmatmul.mubr.f32.gmra.mrb[0].mxu0 %v2042
        %v2171 = vpop.f32.mrb[0].mxu0
        %v2172 = vadd.f32 %v588, %v2171
        %v2173 = vpop.f32.mrb[0].mxu0
        %2174 = vmatprep.mubr.f32.mxu0 0.0
        %2175 = vmatmul.mubr.f32.gmra.mrb[0].mxu0 %v2045
        %v2176 = vpop.f32.mrb[0].mxu0
        %v2177 = vadd.f32 %v588, %v2176
        %v2178 = vpop.f32.mrb[0].mxu0
        %2179 = vmatprep.mubr.f32.mxu0 0.0
        %2180 = vmatmul.mubr.f32.gmra.mrb[0].mxu0 %v2048
        %v2181 = vpop.f32.mrb[0].mxu0
        %v2182 = vadd.f32 %v588, %v2181
        %v2183 = vpop.f32.mrb[0].mxu0
        %2184 = vmatprep.mubr.f32.mxu0 0.0
        %2185 = vmatmul.mubr.f32.gmra.mrb[0].mxu0 %v2051
        %v2186 = vpop.f32.mrb[0].mxu0
        %v2187 = vadd.f32 %v588, %v2186
        %v2188 = vpop.f32.mrb[0].mxu0
        %2189 = vmatprep.mubr.f32.mxu0 0.0
        %2190 = vmatmul.mubr.f32.gmra.mrb[0].mxu0 %v2054
        %v2191 = vpop.f32.mrb[0].mxu0
        %v2192 = vadd.f32 %v588, %v2191
        %v2193 = vpop.f32.mrb[0].mxu0
        %2194 = vmatprep.mubr.f32.mxu0 0.0
        %2195 = vmatmul.mubr.f32.gmra.mrb[0].mxu0 %v2057
        %v2196 = vpop.f32.mrb[0].mxu0
        %v2197 = vadd.f32 %v588, %v2196
        %v2198 = vpop.f32.mrb[0].mxu0
        %2199 = vmatprep.mubr.f32.mxu0 0.0
        %2200 = vmatmul.mubr.f32.gmra.mrb[0].mxu0 %v2060
        %v2201 = vpop.f32.mrb[0].mxu0
        %v2202 = vadd.f32 %v588, %v2201
        %v2203 = vpop.f32.mrb[0].mxu0
        %2204 = vmatprep.mubr.f32.mxu0 0.0
        %2205 = vmatmul.mubr.f32.gmra.mrb[0].mxu0 %v2063
        %v2206 = vpop.f32.mrb[0].mxu0
        %v2207 = vadd.f32 %v588, %v2206
        %v2208 = vpop.f32.mrb[0].mxu0
        %2209 = vdwg.mxu0
        %v2210 = vmax.f32 %v2132, 0.0
        %v2211 = vmax.f32 %v2137, 0.0
        %v2212 = vmax.f32 %v2142, 0.0
        %v2213 = vmax.f32 %v2147, 0.0
        %v2214 = vmax.f32 %v2152, 0.0
        %v2215 = vmax.f32 %v2157, 0.0
        %v2216 = vmax.f32 %v2162, 0.0
        %v2217 = vmax.f32 %v2167, 0.0
        %v2218 = vmax.f32 %v2172, 0.0
        %v2219 = vmax.f32 %v2177, 0.0
        %v2220 = vmax.f32 %v2182, 0.0
        %v2221 = vmax.f32 %v2187, 0.0
        %v2222 = vmax.f32 %v2192, 0.0
        %v2223 = vmax.f32 %v2197, 0.0
        %v2224 = vmax.f32 %v2202, 0.0
        %v2225 = vmax.f32 %v2207, 0.0
        %v2227 = vsel %vm800, %v2210, 0
        %v2230 = vsel %vm800, %v2211, 0
        %v2233 = vsel %vm800, %v2212, 0
        %v2236 = vsel %vm800, %v2213, 0
        %v2239 = vsel %vm800, %v2214, 0
        %v2242 = vsel %vm800, %v2215, 0
        %v2245 = vsel %vm800, %v2216, 0
        %v2248 = vsel %vm800, %v2217, 0
        %v2251 = vsel %vm800, %v2218, 0
        %v2254 = vsel %vm800, %v2219, 0
        %v2257 = vsel %vm800, %v2220, 0
        %v2260 = vsel %vm800, %v2221, 0
        %v2263 = vsel %vm800, %v2222, 0
        %v2266 = vsel %vm800, %v2223, 0
        %v2269 = vsel %vm800, %v2224, 0
        %v2272 = vsel %vm800, %v2225, 0
        %2274 = vmatprep.subr.mxu0 0.0
        %2275 = vmatpush1.msra.mxu0 %v798
        %2276 = vmatprep.subr.mxu0 0.0
        %2277 = vmatpush1.msra.mxu0 0.0
        %2278 = vmatprep.subr.mxu0 0.0
        %2279 = vmatpush1.msra.mxu0 0.0
        %2280 = vmatprep.subr.mxu0 0.0
        %2281 = vmatpush1.msra.mxu0 0.0
        %2282 = vmatprep.subr.mxu0 0.0
        %2283 = vmatpush1.msra.mxu0 0.0
        %2284 = vmatprep.subr.mxu0 0.0
        %2285 = vmatpush1.msra.mxu0 0.0
        %2286 = vmatprep.subr.mxu0 0.0
        %2287 = vmatpush1.msra.mxu0 0.0
        %2288 = vmatprep.subr.mxu0 0.0
        %2289 = vmatpush1.msra.mxu0 0.0
        %2290 = vmatprep.subr.mxu0 0.0
        %2291 = vmatpush1.msra.mxu0 0.0
        %2292 = vmatprep.subr.mxu0 0.0
        %2293 = vmatpush1.msra.mxu0 0.0
        %2294 = vmatprep.subr.mxu0 0.0
        %2295 = vmatpush1.msra.mxu0 0.0
        %2296 = vmatprep.subr.mxu0 0.0
        %2297 = vmatpush1.msra.mxu0 0.0
        %2298 = vmatprep.subr.mxu0 0.0
        %2299 = vmatpush1.msra.mxu0 0.0
        %2300 = vmatprep.subr.mxu0 0.0
        %2301 = vmatpush1.msra.mxu0 0.0
        %2302 = vmatprep.subr.mxu0 0.0
        %2303 = vmatpush1.msra.mxu0 0.0
        %2304 = vmatprep.subr.mxu0 0.0
        %2305 = vmatpush1.msra.mxu0 0.0
        %2306 = vmatprep.subr.mxu0 0.0
        %2307 = vmatpush1.msra.mxu0 0.0
        %2308 = vmatprep.subr.mxu0 0.0
        %2309 = vmatpush1.msra.mxu0 0.0
        %2310 = vmatprep.subr.mxu0 0.0
        %2311 = vmatpush1.msra.mxu0 0.0
        %2312 = vmatprep.subr.mxu0 0.0
        %2313 = vmatpush1.msra.mxu0 0.0
        %2314 = vmatprep.subr.mxu0 0.0
        %2315 = vmatpush1.msra.mxu0 0.0
        %2316 = vmatprep.subr.mxu0 0.0
        %2317 = vmatpush1.msra.mxu0 0.0
        %2318 = vmatprep.subr.mxu0 0.0
        %2319 = vmatpush1.msra.mxu0 0.0
        %2320 = vmatprep.subr.mxu0 0.0
        %2321 = vmatpush1.msra.mxu0 0.0
        %2322 = vmatprep.subr.mxu0 0.0
        %2323 = vmatpush1.msra.mxu0 0.0
        %2324 = vmatprep.subr.mxu0 0.0
        %2325 = vmatpush1.msra.mxu0 0.0
        %2326 = vmatprep.subr.mxu0 0.0
        %2327 = vmatpush1.msra.mxu0 0.0
        %2328 = vmatprep.subr.mxu0 0.0
        %2329 = vmatpush1.msra.mxu0 0.0
        %2330 = vmatprep.subr.mxu0 0.0
        %2331 = vmatpush1.msra.mxu0 0.0
        %2332 = vmatprep.subr.mxu0 0.0
        %2333 = vmatpush1.msra.mxu0 0.0
        %2334 = vmatprep.subr.mxu0 0.0
        %2335 = vmatpush1.msra.mxu0 0.0
        %2336 = vmatprep.subr.mxu0 0.0
        %2337 = vmatpush1.msra.mxu0 0.0
        %2338 = vmatprep.mubr.f32.mxu0 0.0
        %2339 = vmatmul.mubr.f32.gmra.mrb[0].mxu0 %v2227
        %v2340 = vpop.f32.mrb[0].mxu0
        %v2341 = vadd.f32 %v799, %v2340
        %v2342 = vpop.f32.mrb[0].mxu0
        %2343 = vmatprep.mubr.f32.mxu0 0.0
        %2344 = vmatmul.mubr.f32.gmra.mrb[0].mxu0 %v2230
        %v2345 = vpop.f32.mrb[0].mxu0
        %v2346 = vadd.f32 %v799, %v2345
        %v2347 = vpop.f32.mrb[0].mxu0
        %2348 = vmatprep.mubr.f32.mxu0 0.0
        %2349 = vmatmul.mubr.f32.gmra.mrb[0].mxu0 %v2233
        %v2350 = vpop.f32.mrb[0].mxu0
        %v2351 = vadd.f32 %v799, %v2350
        %v2352 = vpop.f32.mrb[0].mxu0
        %2353 = vmatprep.mubr.f32.mxu0 0.0
        %2354 = vmatmul.mubr.f32.gmra.mrb[0].mxu0 %v2236
        %v2355 = vpop.f32.mrb[0].mxu0
        %v2356 = vadd.f32 %v799, %v2355
        %v2357 = vpop.f32.mrb[0].mxu0
        %2358 = vmatprep.mubr.f32.mxu0 0.0
        %2359 = vmatmul.mubr.f32.gmra.mrb[0].mxu0 %v2239
        %v2360 = vpop.f32.mrb[0].mxu0
        %v2361 = vadd.f32 %v799, %v2360
        %v2362 = vpop.f32.mrb[0].mxu0
        %2363 = vmatprep.mubr.f32.mxu0 0.0
        %2364 = vmatmul.mubr.f32.gmra.mrb[0].mxu0 %v2242
        %v2365 = vpop.f32.mrb[0].mxu0
        %v2366 = vadd.f32 %v799, %v2365
        %v2367 = vpop.f32.mrb[0].mxu0
        %2368 = vmatprep.mubr.f32.mxu0 0.0
        %2369 = vmatmul.mubr.f32.gmra.mrb[0].mxu0 %v2245
        %v2370 = vpop.f32.mrb[0].mxu0
        %v2371 = vadd.f32 %v799, %v2370
        %v2372 = vpop.f32.mrb[0].mxu0
        %2373 = vmatprep.mubr.f32.mxu0 0.0
        %2374 = vmatmul.mubr.f32.gmra.mrb[0].mxu0 %v2248
        %v2375 = vpop.f32.mrb[0].mxu0
        %v2376 = vadd.f32 %v799, %v2375
        %v2377 = vpop.f32.mrb[0].mxu0
        %2378 = vmatprep.mubr.f32.mxu0 0.0
        %2379 = vmatmul.mubr.f32.gmra.mrb[0].mxu0 %v2251
        %v2380 = vpop.f32.mrb[0].mxu0
        %v2381 = vadd.f32 %v799, %v2380
        %v2382 = vpop.f32.mrb[0].mxu0
        %2383 = vmatprep.mubr.f32.mxu0 0.0
        %2384 = vmatmul.mubr.f32.gmra.mrb[0].mxu0 %v2254
        %v2385 = vpop.f32.mrb[0].mxu0
        %v2386 = vadd.f32 %v799, %v2385
        %v2387 = vpop.f32.mrb[0].mxu0
        %2388 = vmatprep.mubr.f32.mxu0 0.0
        %2389 = vmatmul.mubr.f32.gmra.mrb[0].mxu0 %v2257
        %v2390 = vpop.f32.mrb[0].mxu0
        %v2391 = vadd.f32 %v799, %v2390
        %v2392 = vpop.f32.mrb[0].mxu0
        %2393 = vmatprep.mubr.f32.mxu0 0.0
        %2394 = vmatmul.mubr.f32.gmra.mrb[0].mxu0 %v2260
        %v2395 = vpop.f32.mrb[0].mxu0
        %v2396 = vadd.f32 %v799, %v2395
        %v2397 = vpop.f32.mrb[0].mxu0
        %2398 = vmatprep.mubr.f32.mxu0 0.0
        %2399 = vmatmul.mubr.f32.gmra.mrb[0].mxu0 %v2263
        %v2400 = vpop.f32.mrb[0].mxu0
        %v2401 = vadd.f32 %v799, %v2400
        %v2402 = vpop.f32.mrb[0].mxu0
        %2403 = vmatprep.mubr.f32.mxu0 0.0
        %2404 = vmatmul.mubr.f32.gmra.mrb[0].mxu0 %v2266
        %v2405 = vpop.f32.mrb[0].mxu0
        %v2406 = vadd.f32 %v799, %v2405
        %v2407 = vpop.f32.mrb[0].mxu0
        %2408 = vmatprep.mubr.f32.mxu0 0.0
        %2409 = vmatmul.mubr.f32.gmra.mrb[0].mxu0 %v2269
        %v2410 = vpop.f32.mrb[0].mxu0
        %v2411 = vadd.f32 %v799, %v2410
        %v2412 = vpop.f32.mrb[0].mxu0
        %2413 = vmatprep.mubr.f32.mxu0 0.0
        %2414 = vmatmul.mubr.f32.gmra.mrb[0].mxu0 %v2272
        %v2415 = vpop.f32.mrb[0].mxu0
        %v2416 = vadd.f32 %v799, %v2415
        %v2417 = vpop.f32.mrb[0].mxu0
        %2418 = vdwg.mxu0
        %v2419 = vmax.f32 %v2341, 0.0
        %v2420 = vmax.f32 %v2346, 0.0
        %v2421 = vmax.f32 %v2351, 0.0
        %v2422 = vmax.f32 %v2356, 0.0
        %v2423 = vmax.f32 %v2361, 0.0
        %v2424 = vmax.f32 %v2366, 0.0
        %v2425 = vmax.f32 %v2371, 0.0
        %v2426 = vmax.f32 %v2376, 0.0
        %v2427 = vmax.f32 %v2381, 0.0
        %v2428 = vmax.f32 %v2386, 0.0
        %v2429 = vmax.f32 %v2391, 0.0
        %v2430 = vmax.f32 %v2396, 0.0
        %v2431 = vmax.f32 %v2401, 0.0
        %v2432 = vmax.f32 %v2406, 0.0
        %v2433 = vmax.f32 %v2411, 0.0
        %v2434 = vmax.f32 %v2416, 0.0
        %v2436 = vsel %vm1015, %v2419, 0
        %v2439 = vsel %vm1015, %v2420, 0
        %v2442 = vsel %vm1015, %v2421, 0
        %v2445 = vsel %vm1015, %v2422, 0
        %v2448 = vsel %vm1015, %v2423, 0
        %v2451 = vsel %vm1015, %v2424, 0
        %v2454 = vsel %vm1015, %v2425, 0
        %v2457 = vsel %vm1015, %v2426, 0
        %v2460 = vsel %vm1015, %v2427, 0
        %v2463 = vsel %vm1015, %v2428, 0
        %v2466 = vsel %vm1015, %v2429, 0
        %v2469 = vsel %vm1015, %v2430, 0
        %v2472 = vsel %vm1015, %v2431, 0
        %v2475 = vsel %vm1015, %v2432, 0
        %v2478 = vsel %vm1015, %v2433, 0
        %v2481 = vsel %vm1015, %v2434, 0
        %2483 = vmatprep.subr.mxu0 0.0
        %2484 = vmatpush1.msra.mxu0 %v1010
        %2485 = vmatprep.subr.mxu0 0.0
        %2486 = vmatpush1.msra.mxu0 %v1011
        %2487 = vmatprep.subr.mxu0 0.0
        %2488 = vmatpush1.msra.mxu0 %v1012
        %2489 = vmatprep.subr.mxu0 0.0
        %2490 = vmatpush1.msra.mxu0 %v1013
        %2491 = vmatprep.subr.mxu0 0.0
        %2492 = vmatpush1.msra.mxu0 0.0
        %2493 = vmatprep.subr.mxu0 0.0
        %2494 = vmatpush1.msra.mxu0 0.0
        %2495 = vmatprep.subr.mxu0 0.0
        %2496 = vmatpush1.msra.mxu0 0.0
        %2497 = vmatprep.subr.mxu0 0.0
        %2498 = vmatpush1.msra.mxu0 0.0
        %2499 = vmatprep.subr.mxu0 0.0
        %2500 = vmatpush1.msra.mxu0 0.0
        %2501 = vmatprep.subr.mxu0 0.0
        %2502 = vmatpush1.msra.mxu0 0.0
        %2503 = vmatprep.subr.mxu0 0.0
        %2504 = vmatpush1.msra.mxu0 0.0
        %2505 = vmatprep.subr.mxu0 0.0
        %2506 = vmatpush1.msra.mxu0 0.0
        %2507 = vmatprep.subr.mxu0 0.0
        %2508 = vmatpush1.msra.mxu0 0.0
        %2509 = vmatprep.subr.mxu0 0.0
        %2510 = vmatpush1.msra.mxu0 0.0
        %2511 = vmatprep.subr.mxu0 0.0
        %2512 = vmatpush1.msra.mxu0 0.0
        %2513 = vmatprep.subr.mxu0 0.0
        %2514 = vmatpush1.msra.mxu0 0.0
        %2515 = vmatprep.subr.mxu0 0.0
        %2516 = vmatpush1.msra.mxu0 0.0
        %2517 = vmatprep.subr.mxu0 0.0
        %2518 = vmatpush1.msra.mxu0 0.0
        %2519 = vmatprep.subr.mxu0 0.0
        %2520 = vmatpush1.msra.mxu0 0.0
        %2521 = vmatprep.subr.mxu0 0.0
        %2522 = vmatpush1.msra.mxu0 0.0
        %2523 = vmatprep.subr.mxu0 0.0
        %2524 = vmatpush1.msra.mxu0 0.0
        %2525 = vmatprep.subr.mxu0 0.0
        %2526 = vmatpush1.msra.mxu0 0.0
        %2527 = vmatprep.subr.mxu0 0.0
        %2528 = vmatpush1.msra.mxu0 0.0
        %2529 = vmatprep.subr.mxu0 0.0
        %2530 = vmatpush1.msra.mxu0 0.0
        %2531 = vmatprep.subr.mxu0 0.0
        %2532 = vmatpush1.msra.mxu0 0.0
        %2533 = vmatprep.subr.mxu0 0.0
        %2534 = vmatpush1.msra.mxu0 0.0
        %2535 = vmatprep.subr.mxu0 0.0
        %2536 = vmatpush1.msra.mxu0 0.0
        %2537 = vmatprep.subr.mxu0 0.0
        %2538 = vmatpush1.msra.mxu0 0.0
        %2539 = vmatprep.subr.mxu0 0.0
        %2540 = vmatpush1.msra.mxu0 0.0
        %2541 = vmatprep.subr.mxu0 0.0
        %2542 = vmatpush1.msra.mxu0 0.0
        %2543 = vmatprep.subr.mxu0 0.0
        %2544 = vmatpush1.msra.mxu0 0.0
        %2545 = vmatprep.subr.mxu0 0.0
        %2546 = vmatpush1.msra.mxu0 0.0
        %2547 = vmatprep.mubr.f32.mxu0 0.0
        %2548 = vmatmul.mubr.f32.gmra.mrb[0].mxu0 %v2436
        %v2549 = vpop.f32.mrb[0].mxu0
        %v2550 = vadd.f32 %v1014, %v2549
        %v2551 = vpop.f32.mrb[0].mxu0
        %2552 = vmatprep.mubr.f32.mxu0 0.0
        %2553 = vmatmul.mubr.f32.gmra.mrb[0].mxu0 %v2439
        %v2554 = vpop.f32.mrb[0].mxu0
        %v2555 = vadd.f32 %v1014, %v2554
        %v2556 = vpop.f32.mrb[0].mxu0
        %2557 = vmatprep.mubr.f32.mxu0 0.0
        %2558 = vmatmul.mubr.f32.gmra.mrb[0].mxu0 %v2442
        %v2559 = vpop.f32.mrb[0].mxu0
        %v2560 = vadd.f32 %v1014, %v2559
        %v2561 = vpop.f32.mrb[0].mxu0
        %2562 = vmatprep.mubr.f32.mxu0 0.0
        %2563 = vmatmul.mubr.f32.gmra.mrb[0].mxu0 %v2445
        %v2564 = vpop.f32.mrb[0].mxu0
        %v2565 = vadd.f32 %v1014, %v2564
        %v2566 = vpop.f32.mrb[0].mxu0
        %2567 = vmatprep.mubr.f32.mxu0 0.0
        %2568 = vmatmul.mubr.f32.gmra.mrb[0].mxu0 %v2448
        %v2569 = vpop.f32.mrb[0].mxu0
        %v2570 = vadd.f32 %v1014, %v2569
        %v2571 = vpop.f32.mrb[0].mxu0
        %2572 = vmatprep.mubr.f32.mxu0 0.0
        %2573 = vmatmul.mubr.f32.gmra.mrb[0].mxu0 %v2451
        %v2574 = vpop.f32.mrb[0].mxu0
        %v2575 = vadd.f32 %v1014, %v2574
        %v2576 = vpop.f32.mrb[0].mxu0
        %2577 = vmatprep.mubr.f32.mxu0 0.0
        %2578 = vmatmul.mubr.f32.gmra.mrb[0].mxu0 %v2454
        %v2579 = vpop.f32.mrb[0].mxu0
        %v2580 = vadd.f32 %v1014, %v2579
        %v2581 = vpop.f32.mrb[0].mxu0
        %2582 = vmatprep.mubr.f32.mxu0 0.0
        %2583 = vmatmul.mubr.f32.gmra.mrb[0].mxu0 %v2457
        %v2584 = vpop.f32.mrb[0].mxu0
        %v2585 = vadd.f32 %v1014, %v2584
        %v2586 = vpop.f32.mrb[0].mxu0
        %2587 = vmatprep.mubr.f32.mxu0 0.0
        %2588 = vmatmul.mubr.f32.gmra.mrb[0].mxu0 %v2460
        %v2589 = vpop.f32.mrb[0].mxu0
        %v2590 = vadd.f32 %v1014, %v2589
        %v2591 = vpop.f32.mrb[0].mxu0
        %2592 = vmatprep.mubr.f32.mxu0 0.0
        %2593 = vmatmul.mubr.f32.gmra.mrb[0].mxu0 %v2463
        %v2594 = vpop.f32.mrb[0].mxu0
        %v2595 = vadd.f32 %v1014, %v2594
        %v2596 = vpop.f32.mrb[0].mxu0
        %2597 = vmatprep.mubr.f32.mxu0 0.0
        %2598 = vmatmul.mubr.f32.gmra.mrb[0].mxu0 %v2466
        %v2599 = vpop.f32.mrb[0].mxu0
        %v2600 = vadd.f32 %v1014, %v2599
        %v2601 = vpop.f32.mrb[0].mxu0
        %2602 = vmatprep.mubr.f32.mxu0 0.0
        %2603 = vmatmul.mubr.f32.gmra.mrb[0].mxu0 %v2469
        %v2604 = vpop.f32.mrb[0].mxu0
        %v2605 = vadd.f32 %v1014, %v2604
        %v2606 = vpop.f32.mrb[0].mxu0
        %2607 = vmatprep.mubr.f32.mxu0 0.0
        %2608 = vmatmul.mubr.f32.gmra.mrb[0].mxu0 %v2472
        %v2609 = vpop.f32.mrb[0].mxu0
        %v2610 = vadd.f32 %v1014, %v2609
        %v2611 = vpop.f32.mrb[0].mxu0
        %2612 = vmatprep.mubr.f32.mxu0 0.0
        %2613 = vmatmul.mubr.f32.gmra.mrb[0].mxu0 %v2475
        %v2614 = vpop.f32.mrb[0].mxu0
        %v2615 = vadd.f32 %v1014, %v2614
        %v2616 = vpop.f32.mrb[0].mxu0
        %2617 = vmatprep.mubr.f32.mxu0 0.0
        %2618 = vmatmul.mubr.f32.gmra.mrb[0].mxu0 %v2478
        %v2619 = vpop.f32.mrb[0].mxu0
        %v2620 = vadd.f32 %v1014, %v2619
        %v2621 = vpop.f32.mrb[0].mxu0
        %2622 = vmatprep.mubr.f32.mxu0 0.0
        %2623 = vmatmul.mubr.f32.gmra.mrb[0].mxu0 %v2481
        %v2624 = vpop.f32.mrb[0].mxu0
        %v2625 = vadd.f32 %v1014, %v2624
        %v2626 = vpop.f32.mrb[0].mxu0
        %2627 = vdwg.mxu0
        %v2628 = vmax.f32 %v2550, 0.0
        %v2629 = vmax.f32 %v2555, 0.0
        %v2630 = vmax.f32 %v2560, 0.0
        %v2631 = vmax.f32 %v2565, 0.0
        %v2632 = vmax.f32 %v2570, 0.0
        %v2633 = vmax.f32 %v2575, 0.0
        %v2634 = vmax.f32 %v2580, 0.0
        %v2635 = vmax.f32 %v2585, 0.0
        %v2636 = vmax.f32 %v2590, 0.0
        %v2637 = vmax.f32 %v2595, 0.0
        %v2638 = vmax.f32 %v2600, 0.0
        %v2639 = vmax.f32 %v2605, 0.0
        %v2640 = vmax.f32 %v2610, 0.0
        %v2641 = vmax.f32 %v2615, 0.0
        %v2642 = vmax.f32 %v2620, 0.0
        %v2643 = vmax.f32 %v2625, 0.0
        %v2645 = vsel %vm1015, %v2628, 0
        %v2648 = vsel %vm1015, %v2629, 0
        %v2651 = vsel %vm1015, %v2630, 0
        %v2654 = vsel %vm1015, %v2631, 0
        %v2657 = vsel %vm1015, %v2632, 0
        %v2660 = vsel %vm1015, %v2633, 0
        %v2663 = vsel %vm1015, %v2634, 0
        %v2666 = vsel %vm1015, %v2635, 0
        %v2669 = vsel %vm1015, %v2636, 0
        %v2672 = vsel %vm1015, %v2637, 0
        %v2675 = vsel %vm1015, %v2638, 0
        %v2678 = vsel %vm1015, %v2639, 0
        %v2681 = vsel %vm1015, %v2640, 0
        %v2684 = vsel %vm1015, %v2641, 0
        %v2687 = vsel %vm1015, %v2642, 0
        %v2690 = vsel %vm1015, %v2643, 0
        %2692 = vmatprep.subr.mxu0 %v1226
        %2693 = vmatpush1.msra.mxu0 %v1225
        %2694 = vmatprep.subr.mxu0 %v1228
        %2695 = vmatpush1.msra.mxu0 %v1227
        %2696 = vmatprep.subr.mxu0 %v1230
        %2697 = vmatpush1.msra.mxu0 %v1229
        %2698 = vmatprep.subr.mxu0 %v1232
        %2699 = vmatpush1.msra.mxu0 %v1231
        %2700 = vmatprep.subr.mxu0 0.0
        %2701 = vmatpush1.msra.mxu0 0.0
        %2702 = vmatprep.subr.mxu0 0.0
        %2703 = vmatpush1.msra.mxu0 0.0
        %2704 = vmatprep.subr.mxu0 0.0
        %2705 = vmatpush1.msra.mxu0 0.0
        %2706 = vmatprep.subr.mxu0 0.0
        %2707 = vmatpush1.msra.mxu0 0.0
        %2708 = vmatprep.subr.mxu0 0.0
        %2709 = vmatpush1.msra.mxu0 0.0
        %2710 = vmatprep.subr.mxu0 0.0
        %2711 = vmatpush1.msra.mxu0 0.0
        %2712 = vmatprep.subr.mxu0 0.0
        %2713 = vmatpush1.msra.mxu0 0.0
        %2714 = vmatprep.subr.mxu0 0.0
        %2715 = vmatpush1.msra.mxu0 0.0
        %2716 = vmatprep.subr.mxu0 0.0
        %2717 = vmatpush1.msra.mxu0 0.0
        %2718 = vmatprep.subr.mxu0 0.0
        %2719 = vmatpush1.msra.mxu0 0.0
        %2720 = vmatprep.subr.mxu0 0.0
        %2721 = vmatpush1.msra.mxu0 0.0
        %2722 = vmatprep.subr.mxu0 0.0
        %2723 = vmatpush1.msra.mxu0 0.0
        %2724 = vmatprep.subr.mxu0 0.0
        %2725 = vmatpush1.msra.mxu0 0.0
        %2726 = vmatprep.subr.mxu0 0.0
        %2727 = vmatpush1.msra.mxu0 0.0
        %2728 = vmatprep.subr.mxu0 0.0
        %2729 = vmatpush1.msra.mxu0 0.0
        %2730 = vmatprep.subr.mxu0 0.0
        %2731 = vmatpush1.msra.mxu0 0.0
        %2732 = vmatprep.subr.mxu0 0.0
        %2733 = vmatpush1.msra.mxu0 0.0
        %2734 = vmatprep.subr.mxu0 0.0
        %2735 = vmatpush1.msra.mxu0 0.0
        %2736 = vmatprep.subr.mxu0 0.0
        %2737 = vmatpush1.msra.mxu0 0.0
        %2738 = vmatprep.subr.mxu0 0.0
        %2739 = vmatpush1.msra.mxu0 0.0
        %2740 = vmatprep.subr.mxu0 0.0
        %2741 = vmatpush1.msra.mxu0 0.0
        %2742 = vmatprep.subr.mxu0 0.0
        %2743 = vmatpush1.msra.mxu0 0.0
        %2744 = vmatprep.subr.mxu0 0.0
        %2745 = vmatpush1.msra.mxu0 0.0
        %2746 = vmatprep.subr.mxu0 0.0
        %2747 = vmatpush1.msra.mxu0 0.0
        %2748 = vmatprep.subr.mxu0 0.0
        %2749 = vmatpush1.msra.mxu0 0.0
        %2750 = vmatprep.subr.mxu0 0.0
        %2751 = vmatpush1.msra.mxu0 0.0
        %2752 = vmatprep.subr.mxu0 0.0
        %2753 = vmatpush1.msra.mxu0 0.0
        %2754 = vmatprep.subr.mxu0 0.0
        %2755 = vmatpush1.msra.mxu0 0.0
        %2756 = vmatprep.mubr.f32.mxu0 0.0
        %2757 = vmatmul.mubr.f32.gmra.mrb[0].mxu0 %v2645
        %v2758 = vpop.f32.mrb[0].mxu0
        %v2759 = vpop.f32.mrb[0].mxu0
        %v2760 = vadd.f32 %v1243, %v2759
        %2761 = vmatprep.mubr.f32.mxu0 0.0
        %2762 = vmatmul.mubr.f32.gmra.mrb[0].mxu0 %v2648
        %v2763 = vpop.f32.mrb[0].mxu0
        %v2764 = vpop.f32.mrb[0].mxu0
        %v2765 = vadd.f32 %v1243, %v2764
        %2766 = vmatprep.mubr.f32.mxu0 0.0
        %2767 = vmatmul.mubr.f32.gmra.mrb[0].mxu0 %v2651
        %v2768 = vpop.f32.mrb[0].mxu0
        %v2769 = vpop.f32.mrb[0].mxu0
        %v2770 = vadd.f32 %v1243, %v2769
        %2771 = vmatprep.mubr.f32.mxu0 0.0
        %2772 = vmatmul.mubr.f32.gmra.mrb[0].mxu0 %v2654
        %v2773 = vpop.f32.mrb[0].mxu0
        %v2774 = vpop.f32.mrb[0].mxu0
        %v2775 = vadd.f32 %v1243, %v2774
        %2776 = vmatprep.mubr.f32.mxu0 0.0
        %2777 = vmatmul.mubr.f32.gmra.mrb[0].mxu0 %v2657
        %v2778 = vpop.f32.mrb[0].mxu0
        %v2779 = vpop.f32.mrb[0].mxu0
        %v2780 = vadd.f32 %v1243, %v2779
        %2781 = vmatprep.mubr.f32.mxu0 0.0
        %2782 = vmatmul.mubr.f32.gmra.mrb[0].mxu0 %v2660
        %v2783 = vpop.f32.mrb[0].mxu0
        %v2784 = vpop.f32.mrb[0].mxu0
        %v2785 = vadd.f32 %v1243, %v2784
        %2786 = vmatprep.mubr.f32.mxu0 0.0
        %2787 = vmatmul.mubr.f32.gmra.mrb[0].mxu0 %v2663
        %v2788 = vpop.f32.mrb[0].mxu0
        %v2789 = vpop.f32.mrb[0].mxu0
        %v2790 = vadd.f32 %v1243, %v2789
        %2791 = vmatprep.mubr.f32.mxu0 0.0
        %2792 = vmatmul.mubr.f32.gmra.mrb[0].mxu0 %v2666
        %v2793 = vpop.f32.mrb[0].mxu0
        %v2794 = vpop.f32.mrb[0].mxu0
        %v2795 = vadd.f32 %v1243, %v2794
        %2796 = vmatprep.mubr.f32.mxu0 0.0
        %2797 = vmatmul.mubr.f32.gmra.mrb[0].mxu0 %v2669
        %v2798 = vpop.f32.mrb[0].mxu0
        %v2799 = vpop.f32.mrb[0].mxu0
        %v2800 = vadd.f32 %v1243, %v2799
        %2801 = vmatprep.mubr.f32.mxu0 0.0
        %2802 = vmatmul.mubr.f32.gmra.mrb[0].mxu0 %v2672
        %v2803 = vpop.f32.mrb[0].mxu0
        %v2804 = vpop.f32.mrb[0].mxu0
        %v2805 = vadd.f32 %v1243, %v2804
        %2806 = vmatprep.mubr.f32.mxu0 0.0
        %2807 = vmatmul.mubr.f32.gmra.mrb[0].mxu0 %v2675
        %v2808 = vpop.f32.mrb[0].mxu0
        %v2809 = vpop.f32.mrb[0].mxu0
        %v2810 = vadd.f32 %v1243, %v2809
        %2811 = vmatprep.mubr.f32.mxu0 0.0
        %2812 = vmatmul.mubr.f32.gmra.mrb[0].mxu0 %v2678
        %v2813 = vpop.f32.mrb[0].mxu0
        %v2814 = vpop.f32.mrb[0].mxu0
        %v2815 = vadd.f32 %v1243, %v2814
        %2816 = vmatprep.mubr.f32.mxu0 0.0
        %2817 = vmatmul.mubr.f32.gmra.mrb[0].mxu0 %v2681
        %v2818 = vpop.f32.mrb[0].mxu0
        %v2819 = vpop.f32.mrb[0].mxu0
        %v2820 = vadd.f32 %v1243, %v2819
        %2821 = vmatprep.mubr.f32.mxu0 0.0
        %2822 = vmatmul.mubr.f32.gmra.mrb[0].mxu0 %v2684
        %v2823 = vpop.f32.mrb[0].mxu0
        %v2824 = vpop.f32.mrb[0].mxu0
        %v2825 = vadd.f32 %v1243, %v2824
        %2826 = vmatprep.mubr.f32.mxu0 0.0
        %2827 = vmatmul.mubr.f32.gmra.mrb[0].mxu0 %v2687
        %v2828 = vpop.f32.mrb[0].mxu0
        %v2829 = vpop.f32.mrb[0].mxu0
        %v2830 = vadd.f32 %v1243, %v2829
        %2831 = vmatprep.mubr.f32.mxu0 0.0
        %2832 = vmatmul.mubr.f32.gmra.mrb[0].mxu0 %v2690
        %v2833 = vpop.f32.mrb[0].mxu0
        %v2834 = vpop.f32.mrb[0].mxu0
        %v2835 = vadd.f32 %v1243, %v2834
        %2836 = vdwg.mxu0
        %v2837 = vxor.u32 %v2760, 2147483648
        %v2838 = vxor.u32 %v2765, 2147483648
        %v2839 = vxor.u32 %v2770, 2147483648
        %v2840 = vxor.u32 %v2775, 2147483648
        %v2841 = vxor.u32 %v2780, 2147483648
        %v2842 = vxor.u32 %v2785, 2147483648
        %v2843 = vxor.u32 %v2790, 2147483648
        %v2844 = vxor.u32 %v2795, 2147483648
        %v2845 = vxor.u32 %v2800, 2147483648
        %v2846 = vxor.u32 %v2805, 2147483648
        %v2847 = vxor.u32 %v2810, 2147483648
        %v2848 = vxor.u32 %v2815, 2147483648
        %v2849 = vxor.u32 %v2820, 2147483648
        %v2850 = vxor.u32 %v2825, 2147483648
        %v2851 = vxor.u32 %v2830, 2147483648
        %v2852 = vxor.u32 %v2835, 2147483648
        %v2853 = vmul.f32 %v2837, 1.442695
        %v2854 = vpow.pop %v2853
        %v2855 = vmul.f32 %v2838, 1.442695
        %v2856 = vpow.pop %v2855
        %v2857 = vmul.f32 %v2839, 1.442695
        %v2858 = vpow.pop %v2857
        %v2859 = vmul.f32 %v2840, 1.442695
        %v2860 = vpow.pop %v2859
        %v2861 = vmul.f32 %v2841, 1.442695
        %v2862 = vpow.pop %v2861
        %v2863 = vmul.f32 %v2842, 1.442695
        %v2864 = vpow.pop %v2863
        %v2865 = vmul.f32 %v2843, 1.442695
        %v2866 = vpow.pop %v2865
        %v2867 = vmul.f32 %v2844, 1.442695
        %v2868 = vpow.pop %v2867
        %v2869 = vmul.f32 %v2845, 1.442695
        %v2870 = vpow.pop %v2869
        %v2871 = vmul.f32 %v2846, 1.442695
        %v2872 = vpow.pop %v2871
        %v2873 = vmul.f32 %v2847, 1.442695
        %v2874 = vpow.pop %v2873
        %v2875 = vmul.f32 %v2848, 1.442695
        %v2876 = vpow.pop %v2875
        %v2877 = vmul.f32 %v2849, 1.442695
        %v2878 = vpow.pop %v2877
        %v2879 = vmul.f32 %v2850, 1.442695
        %v2880 = vpow.pop %v2879
        %v2881 = vmul.f32 %v2851, 1.442695
        %v2882 = vpow.pop %v2881
        %v2883 = vmul.f32 %v2852, 1.442695
        %v2884 = vpow.pop %v2883
        %v2885 = vadd.f32 %v2854, 1.0
        %v2886 = vadd.f32 %v2856, 1.0
        %v2887 = vadd.f32 %v2858, 1.0
        %v2888 = vadd.f32 %v2860, 1.0
        %v2889 = vadd.f32 %v2862, 1.0
        %v2890 = vadd.f32 %v2864, 1.0
        %v2891 = vadd.f32 %v2866, 1.0
        %v2892 = vadd.f32 %v2868, 1.0
        %v2893 = vadd.f32 %v2870, 1.0
        %v2894 = vadd.f32 %v2872, 1.0
        %v2895 = vadd.f32 %v2874, 1.0
        %v2896 = vadd.f32 %v2876, 1.0
        %v2897 = vadd.f32 %v2878, 1.0
        %v2898 = vadd.f32 %v2880, 1.0
        %v2899 = vadd.f32 %v2882, 1.0
        %v2900 = vadd.f32 %v2884, 1.0
        %v2901 = vrcp.pop %v2885
        %v2902 = vmul.f32 1.0, %v2901
        %v2903 = vrcp.pop %v2886
        %v2904 = vmul.f32 1.0, %v2903
        %v2905 = vrcp.pop %v2887
        %v2906 = vmul.f32 1.0, %v2905
        %v2907 = vrcp.pop %v2888
        %v2908 = vmul.f32 1.0, %v2907
        %v2909 = vrcp.pop %v2889
        %v2910 = vmul.f32 1.0, %v2909
        %v2911 = vrcp.pop %v2890
        %v2912 = vmul.f32 1.0, %v2911
        %v2913 = vrcp.pop %v2891
        %v2914 = vmul.f32 1.0, %v2913
        %v2915 = vrcp.pop %v2892
        %v2916 = vmul.f32 1.0, %v2915
        %v2917 = vrcp.pop %v2893
        %v2918 = vmul.f32 1.0, %v2917
        %v2919 = vrcp.pop %v2894
        %v2920 = vmul.f32 1.0, %v2919
        %v2921 = vrcp.pop %v2895
        %v2922 = vmul.f32 1.0, %v2921
        %v2923 = vrcp.pop %v2896
        %v2924 = vmul.f32 1.0, %v2923
        %v2925 = vrcp.pop %v2897
        %v2926 = vmul.f32 1.0, %v2925
        %v2927 = vrcp.pop %v2898
        %v2928 = vmul.f32 1.0, %v2927
        %v2929 = vrcp.pop %v2899
        %v2930 = vmul.f32 1.0, %v2929
        %v2931 = vrcp.pop %v2900
        %v2932 = vmul.f32 1.0, %v2931
        %2933 = vst [vmem:[%s176] sm:$0xff] %v1584
        %2934 = vst [vmem:[%s176 + $0x8] sm:$0xff] %v1586
        %2935 = vst [vmem:[%s176 + $0x10] sm:$0xff] %v2902
        %2936 = vst [vmem:[%s176 + $0x18] sm:$0xff] %v1588
        %2937 = vst [vmem:[%s176 + $0x20] sm:$0xff] %v1590
        %2938 = vst [vmem:[%s176 + $0x28] sm:$0xff] %v2904
        %2939 = vst [vmem:[%s176 + $0x30] sm:$0xff] %v1592
        %2940 = vst [vmem:[%s176 + $0x38] sm:$0xff] %v1594
        %2941 = vst [vmem:[%s176 + $0x40] sm:$0xff] %v2906
        %2942 = vst [vmem:[%s176 + $0x48] sm:$0xff] %v1596
        %2943 = vst [vmem:[%s176 + $0x50] sm:$0xff] %v1598
        %2944 = vst [vmem:[%s176 + $0x58] sm:$0xff] %v2908
        %2945 = vst [vmem:[%s176 + $0x60] sm:$0xff] %v1600
        %2946 = vst [vmem:[%s176 + $0x68] sm:$0xff] %v1602
        %2947 = vst [vmem:[%s176 + $0x70] sm:$0xff] %v2910
        %2948 = vst [vmem:[%s176 + $0x78] sm:$0xff] %v1604
        %2949 = vst [vmem:[%s176 + $0x80] sm:$0xff] %v1606
        %2950 = vst [vmem:[%s176 + $0x88] sm:$0xff] %v2912
        %2951 = vst [vmem:[%s176 + $0x90] sm:$0xff] %v1608
        %2952 = vst [vmem:[%s176 + $0x98] sm:$0xff] %v1610
        %2953 = vst [vmem:[%s176 + $0xa0] sm:$0xff] %v2914
        %2954 = vst [vmem:[%s176 + $0xa8] sm:$0xff] %v1612
        %2955 = vst [vmem:[%s176 + $0xb0] sm:$0xff] %v1614
        %2956 = vst [vmem:[%s176 + $0xb8] sm:$0xff] %v2916
        %2957 = vst [vmem:[%s176 + $0xc0] sm:$0xff] %v1616
        %2958 = vst [vmem:[%s176 + $0xc8] sm:$0xff] %v1618
        %2959 = vst [vmem:[%s176 + $0xd0] sm:$0xff] %v2918
        %2960 = vst [vmem:[%s176 + $0xd8] sm:$0xff] %v1620
        %2961 = vst [vmem:[%s176 + $0xe0] sm:$0xff] %v1622
        %2962 = vst [vmem:[%s176 + $0xe8] sm:$0xff] %v2920
        %2963 = vst [vmem:[%s176 + $0xf0] sm:$0xff] %v1624
        %2964 = vst [vmem:[%s176 + $0xf8] sm:$0xff] %v1626
        %2965 = vst [vmem:[%s176 + $0x100] sm:$0xff] %v2922
        %2966 = vst [vmem:[%s176 + $0x108] sm:$0xff] %v1628
        %2967 = vst [vmem:[%s176 + $0x110] sm:$0xff] %v1630
        %2968 = vst [vmem:[%s176 + $0x118] sm:$0xff] %v2924
        %2969 = vst [vmem:[%s176 + $0x120] sm:$0xff] %v1632
        %2970 = vst [vmem:[%s176 + $0x128] sm:$0xff] %v1634
        %2971 = vst [vmem:[%s176 + $0x130] sm:$0xff] %v2926
        %2972 = vst [vmem:[%s176 + $0x138] sm:$0xff] %v1636
        %2973 = vst [vmem:[%s176 + $0x140] sm:$0xff] %v1638
        %2974 = vst [vmem:[%s176 + $0x148] sm:$0xff] %v2928
        %2975 = vst [vmem:[%s176 + $0x150] sm:$0xff] %v1640
        %2976 = vst [vmem:[%s176 + $0x158] sm:$0xff] %v1642
        %2977 = vst [vmem:[%s176 + $0x160] sm:$0xff] %v2930
        %2978 = vst [vmem:[%s176 + $0x168] sm:$0xff] %v1644
        %2979 = vst [vmem:[%s176 + $0x170] sm:$0xff] %v1646
        %2980 = vst [vmem:[%s176 + $0x178] sm:$0xff] %v2932
        %s2981 = sand.u32 %s75, 1
        %s2982 = scalar_lea.sflag [#allocation4], %s2981
        %s2983 = sand.u32 %s75, 1
        %s2984 = smul.addr %s2983, 384
        %s2985 = scalar_lea.vmem [#allocation7], %s2984
        // Predicated region
        $region37: #{tpu_custom_call.1} parent=27 // pred_check
          %p2986 = pneg %p85
        $region38: #{tpu_custom_call.1} parent=27 // pred_check_branch
          %2988 = sbr.rel (%p2986) target = $region40
        $region39: #{tpu_custom_call.1} parent=27 // pred_region
          %s2989 = smul.u32 16, %s20
          %s2991 = ssub.s32 6144, 6144
          %2992 = vsyncadd %s2982, %s2991
          %s2993 = smul.addr %s2989, 3
          %s2994 = smul.addr %s2993, 128
          %s2995 = scalar_lea.hbm %s2, %s2994
          %s2996 = sshll.u32 %s2985, 4
          %s2997 = int_to_ptr.vmem [resolvable:$true] %s2996
          %3002 = dma.vmem_to_hbm [thread:$0]  %s2997, 6144, %s2995, %s2982, 384, 384, 24
        $region40: #{tpu_custom_call.1} parent=27 // pred_fallthru
          _
      $region28: #{tpu_custom_call.1} parent=5 // pred_fallthru
        _
      %p3003 = scmp.le.s32.totalorder 2, %s15
      // Predicated region
      $region41: #{tpu_custom_call.1} parent=5 // pred_check
        %p3004 = pneg %p3003
      $region42: #{tpu_custom_call.1} parent=5 // pred_check_branch
        %3006 = sbr.rel (%p3004) target = $region44
      $region43: #{tpu_custom_call.1} parent=5 // pred_region
        %s3007 = ssub.s32 %s15, 2
        // Predicated region
        $region45: #{tpu_custom_call.1} parent=43 // pred_check
          %p3008 = pneg %p91
        $region46: #{tpu_custom_call.1} parent=43 // pred_check_branch
          %3010 = sbr.rel (%p3008) target = $region48
        $region47: #{tpu_custom_call.1} parent=43 // pred_region
          %s3011 = sand.u32 %s76, 1
          %s3012 = scalar_lea.sflag [#allocation4], %s3011
          %s3013 = sand.u32 %s76, 1
          %s3014 = smul.addr %s3013, 384
          %s3015 = scalar_lea.vmem [#allocation7], %s3014
          %3016 = dma.done %s3012, 6144
        $region48: #{tpu_custom_call.1} parent=43 // pred_fallthru
          _
      $region44: #{tpu_custom_call.1} parent=5 // pred_fallthru
        _
    $region6: #{tpu_custom_call.1} parent=1 // loop_footer
      %s19 = sadd.s32 1, %s15
    $region7: #{tpu_custom_call.1} parent=1 // loop_footer_branch
      %14 = sbr.rel target = $region3
    $region8: #{tpu_custom_call.1} parent=1 // loop_exit
      _
    %3017 = vsyncpa [#allocation3], 1
    %s3018 = scalar_lea.sflag [#allocation3], 1
    %3019 = vsyncpa %s3018, 1
    %3020 = vsyncpa [#allocation6], 1
    %3021 = vsyncpa [#allocation4], 1
    %s3022 = scalar_lea.sflag [#allocation4], 1
    %3023 = vsyncpa %s3022, 1

</llo_original>
